<compile_context>
chip_gen: v5e
topology: v5e:2x2
jax: 0.10.0
libtpu: 0.0.40
codegen_flags: <defaults>
</compile_context>

<pallas_src>
import jax
import jax.numpy as jnp
from jax.experimental import pallas as pl
from jax.experimental.pallas import tpu as pltpu

BN_EPS = 1e-5


# ----------------------------- kernel -----------------------------

def _batchnorm(y, gamma, beta):
    # y: (M, D). Normalize each feature over batch*seq (biased variance).
    mean = jnp.mean(y, axis=0, keepdims=True)
    centered = y - mean                                   # hoisted, reused twice
    var = jnp.mean(centered * centered, axis=0, keepdims=True)
    inv = jax.lax.rsqrt(var + BN_EPS)
    return centered * inv * gamma + beta


def fused_model_kernel(x_ref,
                       wv_ref, bv_ref, wfc_ref, bfc_ref,
                       g1_ref, be1_ref, g2_ref, be2_ref,
                       w1_ref, b1_ref, w2_ref, b2_ref, w3_ref, b3_ref,
                       wf_ref, bf_ref,
                       out_ref,
                       act_ref):
    layer = pl.program_id(0)
    B, L, D = x_ref.shape
    M = B * L

    # Load input activation into the resident VMEM scratch on the first layer.
    @pl.when(layer == 0)
    def _():
        act_ref[...] = x_ref[...].reshape(M, D)

    x2d = act_ref[...]                                              # (M, D)

    # ---- SingleHeadAttention (Q/K/softmax provably dead; see header) ----
    v = jnp.dot(x2d, wv_ref[...],
                preferred_element_type=jnp.float32) + bv_ref[...]   # (M, dv)
    v_sum = jnp.sum(v.reshape(B, L, -1), axis=1)                    # (B, dv)
    # fc applied once per batch row (all query positions identical), then broadcast.
    attn_b = jnp.dot(v_sum, wfc_ref[...],
                     preferred_element_type=jnp.float32) + bfc_ref[...]   # (B, D)

    res = x2d.reshape(B, L, D) + attn_b[:, None, :]                 # (B, L, D)
    x1 = _batchnorm(res.reshape(M, D), g1_ref[...], be1_ref[...])   # (M, D)

    # ---- feedforward: Linear -> sigmoid, x3 ----
    h = jax.nn.sigmoid(jnp.dot(x1, w1_ref[...],
                               preferred_element_type=jnp.float32) + b1_ref[...])
    h = jax.nn.sigmoid(jnp.dot(h, w2_ref[...],
                               preferred_element_type=jnp.float32) + b2_ref[...])
    h = jax.nn.sigmoid(jnp.dot(h, w3_ref[...],
                               preferred_element_type=jnp.float32) + b3_ref[...])

    x2 = _batchnorm(h + x1, g2_ref[...], be2_ref[...])              # (M, D)
    act_ref[...] = x2

    # ---- final Linear(dx -> dout), folded into the last grid step ----
    @pl.when(layer == pl.num_programs(0) - 1)
    def _():
        y = jnp.dot(x2, wf_ref[...],
                    preferred_element_type=jnp.float32) + bf_ref[...]
        out_ref[...] = y.reshape(B, L, -1)


# ----------------------------- wrapper -----------------------------

def _layer_spec(shape):
    # Stacked per-layer param (N, *tail): squeeze the layer dim, index by grid step.
    tail = tuple(shape[1:])
    zeros = (0,) * len(tail)
    return pl.BlockSpec((None, *tail), lambda n: (n, *zeros))


def _const_spec(shape):
    zeros = (0,) * len(shape)
    return pl.BlockSpec(tuple(shape), lambda n: zeros)


def my_model_forward(x, stacked_params, final_w, final_b):
    """x: (B, L, dx); stacked_params: list of (N, ...) arrays; final_w: (dx, dout)."""
    B, L, D = x.shape
    N = stacked_params[0].shape[0]
    dout = final_w.shape[1]

    in_specs = ([_const_spec(x.shape)]
                + [_layer_spec(p.shape) for p in stacked_params]
                + [_const_spec(final_w.shape), _const_spec(final_b.shape)])
    out_spec = pl.BlockSpec((B, L, dout), lambda n: (0, 0, 0))

    grid_spec = pltpu.PrefetchScalarGridSpec(
        num_scalar_prefetch=0,
        grid=(N,),
        in_specs=in_specs,
        out_specs=out_spec,
        scratch_shapes=[pltpu.VMEM((B * L, D), jnp.float32)],   # resident activation
    )

    return pl.pallas_call(
        fused_model_kernel,
        out_shape=jax.ShapeDtypeStruct((B, L, dout), jnp.float32),
        grid_spec=grid_spec,
        compiler_params=pltpu.CompilerParams(
            dimension_semantics=("arbitrary",)),   # layers are sequential
    )(x, *stacked_params, final_w, final_b)


# ------------------------- parameter construction -------------------------

def init_layer_params(key, dx, dv, expansion):
    """PyTorch-Linear-style init, weights stored pre-transposed as (in, out)."""
    def lin(k, in_f, out_f):
        kw, kb = jax.random.split(k)
        bound = 1.0 / (in_f ** 0.5)
        w = jax.random.uniform(kw, (in_f, out_f), jnp.float32, -bound, bound)
        b = jax.random.uniform(kb, (1, out_f), jnp.float32, -bound, bound)
        return w, b

    keys = jax.random.split(key, 5)
    # NOTE: W_Q / W_K are intentionally not created: they cannot affect the
    # forward output (softmax rows sum to 1; see kernel header).
    wv, bv = lin(keys[0], dx, dv)
    wfc, bfc = lin(keys[1], dv, dx)
    w1, b1 = lin(keys[2], dx, expansion * dx)
    w2, b2 = lin(keys[3], expansion * dx, (expansion - 2) * dx)
    w3, b3 = lin(keys[4], (expansion - 2) * dx, dx)
    g1 = jnp.ones((1, dx), jnp.float32)
    be1 = jnp.zeros((1, dx), jnp.float32)
    g2 = jnp.ones((1, dx), jnp.float32)
    be2 = jnp.zeros((1, dx), jnp.float32)
    return [wv, bv, wfc, bfc, g1, be1, g2, be2, w1, b1, w2, b2, w3, b3]


# ------------------------- pure-JAX reference (full original path) -------------------------

def reference_forward(x, per_layer, final_w, final_b, dq, dk, key):
    """Implements the ORIGINAL module math (incl. Q/K projections and softmax)."""
    B, L, D = x.shape

    def bn(y3d, g, b):
        m = y3d.reshape(B * L, D)
        mean = m.mean(0, keepdims=True)
        var = ((m - mean) ** 2).mean(0, keepdims=True)
        return ((m - mean) * jax.lax.rsqrt(var + BN_EPS) * g + b).reshape(B, L, D)

    for (wv, bv, wfc, bfc, g1, be1, g2, be2, w1, b1, w2, b2, w3, b3) in per_layer:
        key, kq, kk = jax.random.split(key, 3)
        wq = jax.random.normal(kq, (D, dq), jnp.float32) * 0.1   # arbitrary: result-independent
        wk = jax.random.normal(kk, (D, dk), jnp.float32) * 0.1
        q = x @ wq
        k = x @ wk
        v = x @ wv + bv
        a = jnp.einsum('nqc,nkc->nqk', q, k) / jnp.sqrt(jnp.float32(dk))
        a = jax.nn.softmax(a, axis=-1)
        o = jnp.einsum('nqk,ncv->nqv', a, v)
        o = o @ wfc + bfc
        x1 = bn(x + o, g1, be1)
        h = jax.nn.sigmoid(x1.reshape(B * L, D) @ w1 + b1)
        h = jax.nn.sigmoid(h @ w2 + b2)
        h = jax.nn.sigmoid(h @ w3 + b3)
        x = bn(h.reshape(B, L, D) + x1, g2, be2)
    y = x.reshape(B * L, D) @ final_w + final_b
    return y.reshape(B, L, -1)


if __name__ == "__main__":
    # Small, module-consistent shapes.
    B, L = 2, 8
    dx, dq, dk, dv = 32, 16, 16, 16
    expansion, N, dout = 5, 2, 1

    key = jax.random.PRNGKey(0)
    k_x, k_final, *k_layers = jax.random.split(key, 2 + N)

    X = jax.random.normal(k_x, (B, L, dx), jnp.float32)

    per_layer = [init_layer_params(k, dx, dv, expansion) for k in k_layers]
    stacked = [jnp.stack(ps, axis=0) for ps in zip(*per_layer)]   # each (N, ...)

    bound = 1.0 / (dx ** 0.5)
    kfw, kfb = jax.random.split(k_final)
    final_w = jax.random.uniform(kfw, (dx, dout), jnp.float32, -bound, bound)
    final_b = jax.random.uniform(kfb, (1, dout), jnp.float32, -bound, bound)

    out = my_model_forward(X, stacked, final_w, final_b)
    out = jax.block_until_ready(out)
    assert out.shape == (B, L, dout)

    # Validate the dead-compute elimination against the full original math.
    ref = reference_forward(X, per_layer, final_w, final_b, dq, dk, jax.random.PRNGKey(42))
    max_err = float(jnp.max(jnp.abs(out - ref)))
    assert max_err < 1e-3, f"mismatch vs reference, max abs err = {max_err}"

    print("KERNEL_OK")
</pallas_src>

<mosaic_0001>
module attributes {stable_mosaic.version = 11 : i64} {
  func.func @fused_model_kernel(%arg0: i32, %arg1: memref<2x8x32xf32, #tpu.memory_space<vmem>>, %arg2: memref<1x32x16xf32, #tpu.memory_space<vmem>>, %arg3: memref<1x1x16xf32, #tpu.memory_space<vmem>>, %arg4: memref<1x16x32xf32, #tpu.memory_space<vmem>>, %arg5: memref<1x1x32xf32, #tpu.memory_space<vmem>>, %arg6: memref<1x1x32xf32, #tpu.memory_space<vmem>>, %arg7: memref<1x1x32xf32, #tpu.memory_space<vmem>>, %arg8: memref<1x1x32xf32, #tpu.memory_space<vmem>>, %arg9: memref<1x1x32xf32, #tpu.memory_space<vmem>>, %arg10: memref<1x32x160xf32, #tpu.memory_space<vmem>>, %arg11: memref<1x1x160xf32, #tpu.memory_space<vmem>>, %arg12: memref<1x160x96xf32, #tpu.memory_space<vmem>>, %arg13: memref<1x1x96xf32, #tpu.memory_space<vmem>>, %arg14: memref<1x96x32xf32, #tpu.memory_space<vmem>>, %arg15: memref<1x1x32xf32, #tpu.memory_space<vmem>>, %arg16: memref<32x1xf32, #tpu.memory_space<vmem>>, %arg17: memref<1x1xf32, #tpu.memory_space<vmem>>, %arg18: memref<2x8x1xf32, #tpu.memory_space<vmem>>, %arg19: memref<16x32xf32, #tpu.memory_space<vmem>>) attributes {dimension_semantics = [#tpu.dimension_semantics<arbitrary>], iteration_bounds = array<i64: 2>, scalar_prefetch = 0 : i64, scratch_operands = 1 : i64, tpu.core_type = #tpu.core_type<tc>, window_params = [{pipeline_mode = #tpu.pipeline_mode<synchronous>, transform_indices = @transform_0, window_bounds = array<i64: 2, 8, 32>}, {transform_indices = @transform_1, window_bounds = array<i64: 1, 32, 16>}, {transform_indices = @transform_2, window_bounds = array<i64: 1, 1, 16>}, {transform_indices = @transform_3, window_bounds = array<i64: 1, 16, 32>}, {transform_indices = @transform_4, window_bounds = array<i64: 1, 1, 32>}, {transform_indices = @transform_5, window_bounds = array<i64: 1, 1, 32>}, {transform_indices = @transform_6, window_bounds = array<i64: 1, 1, 32>}, {transform_indices = @transform_7, window_bounds = array<i64: 1, 1, 32>}, {transform_indices = @transform_8, window_bounds = array<i64: 1, 1, 32>}, {transform_indices = @transform_9, window_bounds = array<i64: 1, 32, 160>}, {transform_indices = @transform_10, window_bounds = array<i64: 1, 1, 160>}, {transform_indices = @transform_11, window_bounds = array<i64: 1, 160, 96>}, {transform_indices = @transform_12, window_bounds = array<i64: 1, 1, 96>}, {transform_indices = @transform_13, window_bounds = array<i64: 1, 96, 32>}, {transform_indices = @transform_14, window_bounds = array<i64: 1, 1, 32>}, {pipeline_mode = #tpu.pipeline_mode<synchronous>, transform_indices = @transform_15, window_bounds = array<i64: 32, 1>}, {pipeline_mode = #tpu.pipeline_mode<synchronous>, transform_indices = @transform_16, window_bounds = array<i64: 1, 1>}, {pipeline_mode = #tpu.pipeline_mode<synchronous>, transform_indices = @transform_17, window_bounds = array<i64: 2, 8, 1>}]} {
    %c0_i32 = arith.constant 0 : i32
    %0 = arith.cmpi eq, %arg0, %c0_i32 : i32
    %1 = arith.extui %0 : i1 to i32
    %c0_i32_0 = arith.constant 0 : i32
    %2 = arith.cmpi ne, %1, %c0_i32_0 : i32
    scf.if %2 {
      %c0_65 = arith.constant 0 : index
      %c0_66 = arith.constant 0 : index
      %c0_67 = arith.constant 0 : index
      %114 = vector.load %arg1[%c0_65, %c0_66, %c0_67] : memref<2x8x32xf32, #tpu.memory_space<vmem>>, vector<2x8x32xf32>
      %115 = vector.shape_cast %114 : vector<2x8x32xf32> to vector<16x32xf32>
      %c0_68 = arith.constant 0 : index
      %c0_69 = arith.constant 0 : index
      %116 = vector.load %arg19[%c0_68, %c0_69] : memref<16x32xf32, #tpu.memory_space<vmem>>, vector<16x32xf32>
      tpu.vector_store %arg19[%c0_68, %c0_69], %115 {strides = array<i32>} : memref<16x32xf32, #tpu.memory_space<vmem>>, vector<16x32xf32>,
    } else {
    }
    %c0 = arith.constant 0 : index
    %c0_1 = arith.constant 0 : index
    %3 = vector.load %arg19[%c0, %c0_1] : memref<16x32xf32, #tpu.memory_space<vmem>>, vector<16x32xf32>
    %c0_2 = arith.constant 0 : index
    %c0_3 = arith.constant 0 : index
    %c0_4 = arith.constant 0 : index
    %4 = vector.load %arg2[%c0_2, %c0_3, %c0_4] : memref<1x32x16xf32, #tpu.memory_space<vmem>>, vector<1x32x16xf32>
    %5 = vector.shape_cast %4 : vector<1x32x16xf32> to vector<32x16xf32>
    %cst = arith.constant dense<0.000000e+00> : vector<16x16xf32>
    %6 = tpu.matmul %3, %5, %cst {dimension_numbers = #tpu.dot_dimension_numbers<[1], [0], [0], [1], [0, 0, 1, 1], [], []>} : vector<16x32xf32>, vector<32x16xf32>, vector<16x16xf32> -> vector<16x16xf32>
    %c0_5 = arith.constant 0 : index
    %c0_6 = arith.constant 0 : index
    %c0_7 = arith.constant 0 : index
    %7 = vector.load %arg3[%c0_5, %c0_6, %c0_7] : memref<1x1x16xf32, #tpu.memory_space<vmem>>, vector<1x1x16xf32>
    %8 = vector.shape_cast %7 : vector<1x1x16xf32> to vector<1x16xf32>
    %9 = vector.broadcast %8 : vector<1x16xf32> to vector<16x16xf32>
    %10 = arith.addf %6, %9 : vector<16x16xf32>
    %11 = vector.shape_cast %10 : vector<16x16xf32> to vector<2x8x16xf32>
    %cst_8 = arith.constant dense<0.000000e+00> : vector<2x16xf32>
    %12 = vector.multi_reduction <add>, %11, %cst_8 [1] : vector<2x8x16xf32> to vector<2x16xf32>
    %c0_9 = arith.constant 0 : index
    %c0_10 = arith.constant 0 : index
    %c0_11 = arith.constant 0 : index
    %13 = vector.load %arg4[%c0_9, %c0_10, %c0_11] : memref<1x16x32xf32, #tpu.memory_space<vmem>>, vector<1x16x32xf32>
    %14 = vector.shape_cast %13 : vector<1x16x32xf32> to vector<16x32xf32>
    %cst_12 = arith.constant dense<0.000000e+00> : vector<2x32xf32>
    %15 = tpu.matmul %12, %14, %cst_12 {dimension_numbers = #tpu.dot_dimension_numbers<[1], [0], [0], [1], [0, 0, 1, 1], [], []>} : vector<2x16xf32>, vector<16x32xf32>, vector<2x32xf32> -> vector<2x32xf32>
    %c0_13 = arith.constant 0 : index
    %c0_14 = arith.constant 0 : index
    %c0_15 = arith.constant 0 : index
    %16 = vector.load %arg5[%c0_13, %c0_14, %c0_15] : memref<1x1x32xf32, #tpu.memory_space<vmem>>, vector<1x1x32xf32>
    %17 = vector.shape_cast %16 : vector<1x1x32xf32> to vector<1x32xf32>
    %18 = vector.broadcast %17 : vector<1x32xf32> to vector<2x32xf32>
    %19 = arith.addf %15, %18 : vector<2x32xf32>
    %20 = vector.shape_cast %3 : vector<16x32xf32> to vector<2x8x32xf32>
    %21 = vector.shape_cast %19 : vector<2x32xf32> to vector<2x1x32xf32>
    %22 = vector.broadcast %21 : vector<2x1x32xf32> to vector<2x8x32xf32>
    %23 = arith.addf %20, %22 : vector<2x8x32xf32>
    %24 = vector.shape_cast %23 : vector<2x8x32xf32> to vector<16x32xf32>
    %c0_16 = arith.constant 0 : index
    %c0_17 = arith.constant 0 : index
    %c0_18 = arith.constant 0 : index
    %25 = vector.load %arg6[%c0_16, %c0_17, %c0_18] : memref<1x1x32xf32, #tpu.memory_space<vmem>>, vector<1x1x32xf32>
    %26 = vector.shape_cast %25 : vector<1x1x32xf32> to vector<1x32xf32>
    %c0_19 = arith.constant 0 : index
    %c0_20 = arith.constant 0 : index
    %c0_21 = arith.constant 0 : index
    %27 = vector.load %arg7[%c0_19, %c0_20, %c0_21] : memref<1x1x32xf32, #tpu.memory_space<vmem>>, vector<1x1x32xf32>
    %28 = vector.shape_cast %27 : vector<1x1x32xf32> to vector<1x32xf32>
    %cst_22 = arith.constant dense<0.000000e+00> : vector<32xf32>
    %29 = vector.multi_reduction <add>, %24, %cst_22 [0] : vector<16x32xf32> to vector<32xf32>
    %30 = vector.shape_cast %29 : vector<32xf32> to vector<1x32xf32>
    %cst_23 = arith.constant 1.600000e+01 : f32
    %31 = vector.broadcast %cst_23 : f32 to vector<1x32xf32>
    %32 = arith.divf %30, %31 : vector<1x32xf32>
    %33 = vector.broadcast %32 : vector<1x32xf32> to vector<16x32xf32>
    %34 = arith.subf %24, %33 : vector<16x32xf32>
    %35 = arith.mulf %34, %34 : vector<16x32xf32>
    %cst_24 = arith.constant dense<0.000000e+00> : vector<32xf32>
    %36 = vector.multi_reduction <add>, %35, %cst_24 [0] : vector<16x32xf32> to vector<32xf32>
    %37 = vector.shape_cast %36 : vector<32xf32> to vector<1x32xf32>
    %cst_25 = arith.constant 1.600000e+01 : f32
    %38 = vector.broadcast %cst_25 : f32 to vector<1x32xf32>
    %39 = arith.divf %37, %38 : vector<1x32xf32>
    %cst_26 = arith.constant 9.99999974E-6 : f32
    %40 = vector.broadcast %cst_26 : f32 to vector<1x32xf32>
    %41 = arith.addf %39, %40 : vector<1x32xf32>
    %42 = math.rsqrt %41 : vector<1x32xf32>
    %43 = vector.broadcast %42 : vector<1x32xf32> to vector<16x32xf32>
    %44 = arith.mulf %34, %43 : vector<16x32xf32>
    %45 = vector.broadcast %26 : vector<1x32xf32> to vector<16x32xf32>
    %46 = arith.mulf %44, %45 : vector<16x32xf32>
    %47 = vector.broadcast %28 : vector<1x32xf32> to vector<16x32xf32>
    %48 = arith.addf %46, %47 : vector<16x32xf32>
    %c0_27 = arith.constant 0 : index
    %c0_28 = arith.constant 0 : index
    %c0_29 = arith.constant 0 : index
    %49 = vector.load %arg10[%c0_27, %c0_28, %c0_29] : memref<1x32x160xf32, #tpu.memory_space<vmem>>, vector<1x32x160xf32>
    %50 = vector.shape_cast %49 : vector<1x32x160xf32> to vector<32x160xf32>
    %cst_30 = arith.constant dense<0.000000e+00> : vector<16x160xf32>
    %51 = tpu.matmul %48, %50, %cst_30 {dimension_numbers = #tpu.dot_dimension_numbers<[1], [0], [0], [1], [0, 0, 1, 1], [], []>} : vector<16x32xf32>, vector<32x160xf32>, vector<16x160xf32> -> vector<16x160xf32>
    %c0_31 = arith.constant 0 : index
    %c0_32 = arith.constant 0 : index
    %c0_33 = arith.constant 0 : index
    %52 = vector.load %arg11[%c0_31, %c0_32, %c0_33] : memref<1x1x160xf32, #tpu.memory_space<vmem>>, vector<1x1x160xf32>
    %53 = vector.shape_cast %52 : vector<1x1x160xf32> to vector<1x160xf32>
    %54 = vector.broadcast %53 : vector<1x160xf32> to vector<16x160xf32>
    %55 = arith.addf %51, %54 : vector<16x160xf32>
    %56 = arith.negf %55 : vector<16x160xf32>
    %57 = math.exp %56 : vector<16x160xf32>
    %cst_34 = arith.constant 1.000000e+00 : f32
    %58 = vector.broadcast %cst_34 : f32 to vector<16x160xf32>
    %59 = arith.addf %58, %57 : vector<16x160xf32>
    %60 = arith.divf %58, %59 : vector<16x160xf32>
    %c0_35 = arith.constant 0 : index
    %c0_36 = arith.constant 0 : index
    %c0_37 = arith.constant 0 : index
    %61 = vector.load %arg12[%c0_35, %c0_36, %c0_37] : memref<1x160x96xf32, #tpu.memory_space<vmem>>, vector<1x160x96xf32>
    %62 = vector.shape_cast %61 : vector<1x160x96xf32> to vector<160x96xf32>
    %cst_38 = arith.constant dense<0.000000e+00> : vector<16x96xf32>
    %63 = tpu.matmul %60, %62, %cst_38 {dimension_numbers = #tpu.dot_dimension_numbers<[1], [0], [0], [1], [0, 0, 1, 1], [], []>} : vector<16x160xf32>, vector<160x96xf32>, vector<16x96xf32> -> vector<16x96xf32>
    %c0_39 = arith.constant 0 : index
    %c0_40 = arith.constant 0 : index
    %c0_41 = arith.constant 0 : index
    %64 = vector.load %arg13[%c0_39, %c0_40, %c0_41] : memref<1x1x96xf32, #tpu.memory_space<vmem>>, vector<1x1x96xf32>
    %65 = vector.shape_cast %64 : vector<1x1x96xf32> to vector<1x96xf32>
    %66 = vector.broadcast %65 : vector<1x96xf32> to vector<16x96xf32>
    %67 = arith.addf %63, %66 : vector<16x96xf32>
    %68 = arith.negf %67 : vector<16x96xf32>
    %69 = math.exp %68 : vector<16x96xf32>
    %cst_42 = arith.constant 1.000000e+00 : f32
    %70 = vector.broadcast %cst_42 : f32 to vector<16x96xf32>
    %71 = arith.addf %70, %69 : vector<16x96xf32>
    %72 = arith.divf %70, %71 : vector<16x96xf32>
    %c0_43 = arith.constant 0 : index
    %c0_44 = arith.constant 0 : index
    %c0_45 = arith.constant 0 : index
    %73 = vector.load %arg14[%c0_43, %c0_44, %c0_45] : memref<1x96x32xf32, #tpu.memory_space<vmem>>, vector<1x96x32xf32>
    %74 = vector.shape_cast %73 : vector<1x96x32xf32> to vector<96x32xf32>
    %cst_46 = arith.constant dense<0.000000e+00> : vector<16x32xf32>
    %75 = tpu.matmul %72, %74, %cst_46 {dimension_numbers = #tpu.dot_dimension_numbers<[1], [0], [0], [1], [0, 0, 1, 1], [], []>} : vector<16x96xf32>, vector<96x32xf32>, vector<16x32xf32> -> vector<16x32xf32>
    %c0_47 = arith.constant 0 : index
    %c0_48 = arith.constant 0 : index
    %c0_49 = arith.constant 0 : index
    %76 = vector.load %arg15[%c0_47, %c0_48, %c0_49] : memref<1x1x32xf32, #tpu.memory_space<vmem>>, vector<1x1x32xf32>
    %77 = vector.shape_cast %76 : vector<1x1x32xf32> to vector<1x32xf32>
    %78 = vector.broadcast %77 : vector<1x32xf32> to vector<16x32xf32>
    %79 = arith.addf %75, %78 : vector<16x32xf32>
    %80 = arith.negf %79 : vector<16x32xf32>
    %81 = math.exp %80 : vector<16x32xf32>
    %cst_50 = arith.constant 1.000000e+00 : f32
    %82 = vector.broadcast %cst_50 : f32 to vector<16x32xf32>
    %83 = arith.addf %82, %81 : vector<16x32xf32>
    %84 = arith.divf %82, %83 : vector<16x32xf32>
    %85 = arith.addf %84, %48 : vector<16x32xf32>
    %c0_51 = arith.constant 0 : index
    %c0_52 = arith.constant 0 : index
    %c0_53 = arith.constant 0 : index
    %86 = vector.load %arg8[%c0_51, %c0_52, %c0_53] : memref<1x1x32xf32, #tpu.memory_space<vmem>>, vector<1x1x32xf32>
    %87 = vector.shape_cast %86 : vector<1x1x32xf32> to vector<1x32xf32>
    %c0_54 = arith.constant 0 : index
    %c0_55 = arith.constant 0 : index
    %c0_56 = arith.constant 0 : index
    %88 = vector.load %arg9[%c0_54, %c0_55, %c0_56] : memref<1x1x32xf32, #tpu.memory_space<vmem>>, vector<1x1x32xf32>
    %89 = vector.shape_cast %88 : vector<1x1x32xf32> to vector<1x32xf32>
    %cst_57 = arith.constant dense<0.000000e+00> : vector<32xf32>
    %90 = vector.multi_reduction <add>, %85, %cst_57 [0] : vector<16x32xf32> to vector<32xf32>
    %91 = vector.shape_cast %90 : vector<32xf32> to vector<1x32xf32>
    %cst_58 = arith.constant 1.600000e+01 : f32
    %92 = vector.broadcast %cst_58 : f32 to vector<1x32xf32>
    %93 = arith.divf %91, %92 : vector<1x32xf32>
    %94 = vector.broadcast %93 : vector<1x32xf32> to vector<16x32xf32>
    %95 = arith.subf %85, %94 : vector<16x32xf32>
    %96 = arith.mulf %95, %95 : vector<16x32xf32>
    %cst_59 = arith.constant dense<0.000000e+00> : vector<32xf32>
    %97 = vector.multi_reduction <add>, %96, %cst_59 [0] : vector<16x32xf32> to vector<32xf32>
    %98 = vector.shape_cast %97 : vector<32xf32> to vector<1x32xf32>
    %cst_60 = arith.constant 1.600000e+01 : f32
    %99 = vector.broadcast %cst_60 : f32 to vector<1x32xf32>
    %100 = arith.divf %98, %99 : vector<1x32xf32>
    %cst_61 = arith.constant 9.99999974E-6 : f32
    %101 = vector.broadcast %cst_61 : f32 to vector<1x32xf32>
    %102 = arith.addf %100, %101 : vector<1x32xf32>
    %103 = math.rsqrt %102 : vector<1x32xf32>
    %104 = vector.broadcast %103 : vector<1x32xf32> to vector<16x32xf32>
    %105 = arith.mulf %95, %104 : vector<16x32xf32>
    %106 = vector.broadcast %87 : vector<1x32xf32> to vector<16x32xf32>
    %107 = arith.mulf %105, %106 : vector<16x32xf32>
    %108 = vector.broadcast %89 : vector<1x32xf32> to vector<16x32xf32>
    %109 = arith.addf %107, %108 : vector<16x32xf32>
    %c0_62 = arith.constant 0 : index
    %c0_63 = arith.constant 0 : index
    %110 = vector.load %arg19[%c0_62, %c0_63] : memref<16x32xf32, #tpu.memory_space<vmem>>, vector<16x32xf32>
    tpu.vector_store %arg19[%c0_62, %c0_63], %109 {strides = array<i32>} : memref<16x32xf32, #tpu.memory_space<vmem>>, vector<16x32xf32>,
    %c1_i32 = arith.constant 1 : i32
    %111 = arith.cmpi eq, %arg0, %c1_i32 : i32
    %112 = arith.extui %111 : i1 to i32
    %c0_i32_64 = arith.constant 0 : i32
    %113 = arith.cmpi ne, %112, %c0_i32_64 : i32
    scf.if %113 {
      %c0_65 = arith.constant 0 : index
      %c0_66 = arith.constant 0 : index
      %114 = vector.load %arg16[%c0_65, %c0_66] : memref<32x1xf32, #tpu.memory_space<vmem>>, vector<32x1xf32>
      %cst_67 = arith.constant dense<0.000000e+00> : vector<16x1xf32>
      %115 = tpu.matmul %109, %114, %cst_67 {dimension_numbers = #tpu.dot_dimension_numbers<[1], [0], [0], [1], [0, 0, 1, 1], [], []>} : vector<16x32xf32>, vector<32x1xf32>, vector<16x1xf32> -> vector<16x1xf32>
      %c0_68 = arith.constant 0 : index
      %c0_69 = arith.constant 0 : index
      %116 = vector.load %arg17[%c0_68, %c0_69] : memref<1x1xf32, #tpu.memory_space<vmem>>, vector<1x1xf32>
      %117 = vector.broadcast %116 : vector<1x1xf32> to vector<16x1xf32>
      %118 = arith.addf %115, %117 : vector<16x1xf32>
      %119 = vector.shape_cast %118 : vector<16x1xf32> to vector<2x8x1xf32>
      %c0_70 = arith.constant 0 : index
      %c0_71 = arith.constant 0 : index
      %c0_72 = arith.constant 0 : index
      %120 = vector.load %arg18[%c0_70, %c0_71, %c0_72] : memref<2x8x1xf32, #tpu.memory_space<vmem>>, vector<2x8x1xf32>
      tpu.vector_store %arg18[%c0_70, %c0_71, %c0_72], %119 {strides = array<i32>} : memref<2x8x1xf32, #tpu.memory_space<vmem>>, vector<2x8x1xf32>,
    } else {
    }
    return
  }
  func.func @transform_0(%arg0: i32) -> (i32, i32, i32) {
    %c0_i32 = arith.constant 0 : i32
    %c0_i32_0 = arith.constant 0 : i32
    %c0_i32_1 = arith.constant 0 : i32
    %c0_i32_2 = arith.constant 0 : i32
    return %c0_i32, %c0_i32_0, %c0_i32_1 : i32, i32, i32
  }
  func.func @transform_1(%arg0: i32) -> (i32, i32, i32) {
    %c0_i32 = arith.constant 0 : i32
    %c0_i32_0 = arith.constant 0 : i32
    %c0_i32_1 = arith.constant 0 : i32
    return %arg0, %c0_i32, %c0_i32_0 : i32, i32, i32
  }
  func.func @transform_2(%arg0: i32) -> (i32, i32, i32) {
    %c0_i32 = arith.constant 0 : i32
    %c0_i32_0 = arith.constant 0 : i32
    %c0_i32_1 = arith.constant 0 : i32
    return %arg0, %c0_i32, %c0_i32_0 : i32, i32, i32
  }
  func.func @transform_3(%arg0: i32) -> (i32, i32, i32) {
    %c0_i32 = arith.constant 0 : i32
    %c0_i32_0 = arith.constant 0 : i32
    %c0_i32_1 = arith.constant 0 : i32
    return %arg0, %c0_i32, %c0_i32_0 : i32, i32, i32
  }
  func.func @transform_4(%arg0: i32) -> (i32, i32, i32) {
    %c0_i32 = arith.constant 0 : i32
    %c0_i32_0 = arith.constant 0 : i32
    %c0_i32_1 = arith.constant 0 : i32
    return %arg0, %c0_i32, %c0_i32_0 : i32, i32, i32
  }
  func.func @transform_5(%arg0: i32) -> (i32, i32, i32) {
    %c0_i32 = arith.constant 0 : i32
    %c0_i32_0 = arith.constant 0 : i32
    %c0_i32_1 = arith.constant 0 : i32
    return %arg0, %c0_i32, %c0_i32_0 : i32, i32, i32
  }
  func.func @transform_6(%arg0: i32) -> (i32, i32, i32) {
    %c0_i32 = arith.constant 0 : i32
    %c0_i32_0 = arith.constant 0 : i32
    %c0_i32_1 = arith.constant 0 : i32
    return %arg0, %c0_i32, %c0_i32_0 : i32, i32, i32
  }
  func.func @transform_7(%arg0: i32) -> (i32, i32, i32) {
    %c0_i32 = arith.constant 0 : i32
    %c0_i32_0 = arith.constant 0 : i32
    %c0_i32_1 = arith.constant 0 : i32
    return %arg0, %c0_i32, %c0_i32_0 : i32, i32, i32
  }
  func.func @transform_8(%arg0: i32) -> (i32, i32, i32) {
    %c0_i32 = arith.constant 0 : i32
    %c0_i32_0 = arith.constant 0 : i32
    %c0_i32_1 = arith.constant 0 : i32
    return %arg0, %c0_i32, %c0_i32_0 : i32, i32, i32
  }
  func.func @transform_9(%arg0: i32) -> (i32, i32, i32) {
    %c0_i32 = arith.constant 0 : i32
    %c0_i32_0 = arith.constant 0 : i32
    %c0_i32_1 = arith.constant 0 : i32
    return %arg0, %c0_i32, %c0_i32_0 : i32, i32, i32
  }
  func.func @transform_10(%arg0: i32) -> (i32, i32, i32) {
    %c0_i32 = arith.constant 0 : i32
    %c0_i32_0 = arith.constant 0 : i32
    %c0_i32_1 = arith.constant 0 : i32
    return %arg0, %c0_i32, %c0_i32_0 : i32, i32, i32
  }
  func.func @transform_11(%arg0: i32) -> (i32, i32, i32) {
    %c0_i32 = arith.constant 0 : i32
    %c0_i32_0 = arith.constant 0 : i32
    %c0_i32_1 = arith.constant 0 : i32
    return %arg0, %c0_i32, %c0_i32_0 : i32, i32, i32
  }
  func.func @transform_12(%arg0: i32) -> (i32, i32, i32) {
    %c0_i32 = arith.constant 0 : i32
    %c0_i32_0 = arith.constant 0 : i32
    %c0_i32_1 = arith.constant 0 : i32
    return %arg0, %c0_i32, %c0_i32_0 : i32, i32, i32
  }
  func.func @transform_13(%arg0: i32) -> (i32, i32, i32) {
    %c0_i32 = arith.constant 0 : i32
    %c0_i32_0 = arith.constant 0 : i32
    %c0_i32_1 = arith.constant 0 : i32
    return %arg0, %c0_i32, %c0_i32_0 : i32, i32, i32
  }
  func.func @transform_14(%arg0: i32) -> (i32, i32, i32) {
    %c0_i32 = arith.constant 0 : i32
    %c0_i32_0 = arith.constant 0 : i32
    %c0_i32_1 = arith.constant 0 : i32
    return %arg0, %c0_i32, %c0_i32_0 : i32, i32, i32
  }
  func.func @transform_15(%arg0: i32) -> (i32, i32) {
    %c0_i32 = arith.constant 0 : i32
    %c0_i32_0 = arith.constant 0 : i32
    %c0_i32_1 = arith.constant 0 : i32
    return %c0_i32, %c0_i32_0 : i32, i32
  }
  func.func @transform_16(%arg0: i32) -> (i32, i32) {
    %c0_i32 = arith.constant 0 : i32
    %c0_i32_0 = arith.constant 0 : i32
    %c0_i32_1 = arith.constant 0 : i32
    return %c0_i32, %c0_i32_0 : i32, i32
  }
  func.func @transform_17(%arg0: i32) -> (i32, i32, i32) {
    %c0_i32 = arith.constant 0 : i32
    %c0_i32_0 = arith.constant 0 : i32
    %c0_i32_1 = arith.constant 0 : i32
    %c0_i32_2 = arith.constant 0 : i32
    return %c0_i32, %c0_i32_0, %c0_i32_1 : i32, i32, i32
  }
}

</mosaic_0001>

<llo_original>
// kernel: tpu_custom_call.1
$region0: #{tpu_custom_call.1}
  #allocation0 [shape = 'u32[]', space=smem, size = 0x4, offset = 0x4, fixed_abs, tag = 'smem constant byte address 0x4 - core index']
  #allocation1 [shape = 'u32[72,128]{1,0:T(1,128)}', space=vmem, size = 0x9000, scoped, tag = 'internal scratch']
  #allocation2 [shape = 'f32[16,32]{1,0:T(8,128)}', space=vmem, size = 0x2000, scoped, tag = 'scratch operand']
  #allocation3 [shape = 'f32[1,1]{1,0:T(1,128)S(1)}', space=vmem, size = 0x200, scoped, tag = 'scoped memory for tpu_custom_call.1']
  %s0 = inlined_call_operand.vmem [shape: f32[2,8,32], index: 0, kind: input, shape index: {}]
  %s1 = inlined_call_operand.vmem [shape: f32[2,32,16], index: 1, kind: input, shape index: {}]
  %s2 = inlined_call_operand.vmem [shape: f32[2,1,16], index: 2, kind: input, shape index: {}]
  %s3 = inlined_call_operand.vmem [shape: f32[2,16,32], index: 3, kind: input, shape index: {}]
  %s4 = inlined_call_operand.vmem [shape: f32[2,1,32], index: 4, kind: input, shape index: {}]
  %s5 = inlined_call_operand.vmem [shape: f32[2,1,32], index: 5, kind: input, shape index: {}]
  %s6 = inlined_call_operand.vmem [shape: f32[2,1,32], index: 6, kind: input, shape index: {}]
  %s7 = inlined_call_operand.vmem [shape: f32[2,1,32], index: 7, kind: input, shape index: {}]
  %s8 = inlined_call_operand.vmem [shape: f32[2,1,32], index: 8, kind: input, shape index: {}]
  %s9 = inlined_call_operand.vmem [shape: f32[2,32,160], index: 9, kind: input, shape index: {}]
  %s10 = inlined_call_operand.vmem [shape: f32[2,1,160], index: 10, kind: input, shape index: {}]
  %s11 = inlined_call_operand.hbm [shape: f32[2,160,96], index: 11, kind: input, shape index: {}]
  %s12 = inlined_call_operand.vmem [shape: f32[2,1,96], index: 12, kind: input, shape index: {}]
  %s13 = inlined_call_operand.vmem [shape: f32[2,96,32], index: 13, kind: input, shape index: {}]
  %s14 = inlined_call_operand.vmem [shape: f32[2,1,32], index: 14, kind: input, shape index: {}]
  %s15 = inlined_call_operand.vmem [shape: f32[32,1], index: 15, kind: input, shape index: {}]
  %s16 = inlined_call_operand.<no memory space> [shape: f32[1,1], index: 16, kind: input, shape index: {}]
  %s17 = inlined_call_operand.vmem [shape: f32[2,8,1], index: 17, kind: output, shape index: {}]
  %s18 = sld [smem:[#allocation0]]
  $region113: #{tpu_custom_call.1} parent=0
    _
  %s20 = ssub.s32 1, %s18
  %s21 = scalar_select 0, %s20, %s18
  %v22 = vstv %s16
  %23 = vst [vmem:[#allocation3] sm:$0x1] %v22
  $region1: #{tpu_custom_call.1} parent=0
    #allocation4 [shape = 'u8[163840]{0}', space=vmem, size = 0x28000, scoped, tag = 'input window, operand 11']
    #allocation5 [shape = 's32[2]{0}', space=sflag, size = 0x8, scoped, tag = 'scoped memory for tpu_custom_call.1']
    %24 = vsyncpa [#allocation5], 0
    %s25 = scalar_lea.sflag [#allocation5], 1
    %26 = vsyncpa %s25, 0
    loop: start=0, step=1, limit=4
    $region2: #{tpu_custom_call.1} parent=1 // loop_pre_header
      _
    $region3: #{tpu_custom_call.1} parent=1 // loop_header
      %s28 = sphi 0, %s32
      %p29 = scmp.ge.s32.totalorder %s28, 4
      %s36 = sphi 0, %s36
      %s38 = sphi 0, %s36
      %s39 = sphi 0, %s38
      %s53 = sphi 0, %s39
      %s59 = sphi 0, %s61
      %s62 = sphi 0, %s59
      %s63 = sphi 0, %s62
      %s79 = sphi 0, %s63
      %s85 = sphi 0, %s87
      %s88 = sphi 0, %s85
      %s89 = sphi 0, %s88
      %s105 = sphi 0, %s89
      %s111 = sphi 0, %s113
      %s114 = sphi 0, %s111
      %s115 = sphi 0, %s114
      %s131 = sphi 0, %s115
      %s137 = sphi 0, %s139
      %s140 = sphi 0, %s137
      %s141 = sphi 0, %s140
      %s157 = sphi 0, %s141
      %s163 = sphi 0, %s165
      %s166 = sphi 0, %s163
      %s167 = sphi 0, %s166
      %s183 = sphi 0, %s167
      %s189 = sphi 0, %s191
      %s192 = sphi 0, %s189
      %s193 = sphi 0, %s192
      %s209 = sphi 0, %s193
      %s215 = sphi 0, %s217
      %s218 = sphi 0, %s215
      %s219 = sphi 0, %s218
      %s235 = sphi 0, %s219
      %s241 = sphi 0, %s243
      %s244 = sphi 0, %s241
      %s245 = sphi 0, %s244
      %s261 = sphi 0, %s245
      %s267 = sphi 0, %s269
      %s270 = sphi 0, %s267
      %s271 = sphi 0, %s270
      %s287 = sphi 0, %s271
      %s293 = sphi 0, %s295
      %s296 = sphi 0, %s293
      %s297 = sphi 0, %s296
      %s313 = sphi 0, %s297
      %s319 = sphi 0, %s321
      %s322 = sphi 0, %s319
      %s323 = sphi 0, %s322
      %s339 = sphi 0, %s323
      %s345 = sphi 0, %s347
      %s348 = sphi 0, %s345
      %s349 = sphi 0, %s348
      %s365 = sphi 0, %s349
      %s371 = sphi 0, %s373
      %s374 = sphi 0, %s371
      %s375 = sphi 0, %s374
      %s391 = sphi 0, %s375
      %s397 = sphi 0, %s399
      %s400 = sphi 0, %s397
      %s401 = sphi 0, %s400
      %s417 = sphi 0, %s401
      %s421 = sphi 0, %s421
      %s423 = sphi 0, %s421
      %s424 = sphi 0, %s423
      %s438 = sphi 0, %s424
      %s442 = sphi 0, %s442
      %s444 = sphi 0, %s442
      %s445 = sphi 0, %s444
      %s459 = sphi 0, %s445
      %s463 = sphi 0, %s463
      %s465 = sphi 0, %s463
      %s466 = sphi 0, %s465
      %s480 = sphi 0, %s466
    $region4: #{tpu_custom_call.1} parent=1 // loop_header_branch
      %31 = sbr.rel (%p29) target = $region8
    $region5: #{tpu_custom_call.1} parent=1 // loop_body
      %s33 = ssub.s32 %s28, 1
      %s34 = ssub.s32 %s28, 2
      %s35 = sadd.s32 %s28, 1
      %s37 = sadd.s32 %s36, 1
      %p40 = scmp.eq.s32.totalorder %s28, 1
      %p41 = scmp.ne.s32.totalorder %s36, %s38
      %p42 = scmp.eq.s32.totalorder %s28, 0
      %p43 = por %p41, %p42
      %p44 = scmp.ne.s32.totalorder %s36, %s38
      %p45 = scmp.eq.s32.totalorder %s33, 1
      %p46 = por %p44, %p45
      %p47 = scmp.ne.s32.totalorder %s38, %s39
      %p48 = scmp.eq.s32.totalorder %s33, 0
      %p49 = por %p47, %p48
      %p50 = scmp.ne.s32.totalorder %s38, %s39
      %p51 = scmp.eq.s32.totalorder %s34, 1
      %p52 = por %p50, %p51
      %p54 = scmp.ne.s32.totalorder %s39, %s53
      %p55 = scmp.eq.s32.totalorder %s34, 0
      %p56 = por %p54, %p55
      %s57 = ssub.s32 %s28, %s35
      %p58 = scmp.eq.s32.totalorder %s57, 0
      %s60 = sadd.s32 %s59, 1
      %s61 = scalar_select %p58, %s59, %s60
      %p64 = pneg %p58
      %p65 = scmp.eq.s32.totalorder %s28, 1
      %p66 = por %p64, %p65
      %p67 = scmp.ne.s32.totalorder %s59, %s62
      %p68 = scmp.eq.s32.totalorder %s28, 0
      %p69 = por %p67, %p68
      %p70 = scmp.ne.s32.totalorder %s59, %s62
      %p71 = scmp.eq.s32.totalorder %s33, 1
      %p72 = por %p70, %p71
      %p73 = scmp.ne.s32.totalorder %s62, %s63
      %p74 = scmp.eq.s32.totalorder %s33, 0
      %p75 = por %p73, %p74
      %p76 = scmp.ne.s32.totalorder %s62, %s63
      %p77 = scmp.eq.s32.totalorder %s34, 1
      %p78 = por %p76, %p77
      %p80 = scmp.ne.s32.totalorder %s63, %s79
      %p81 = scmp.eq.s32.totalorder %s34, 0
      %p82 = por %p80, %p81
      %s83 = ssub.s32 %s28, %s35
      %p84 = scmp.eq.s32.totalorder %s83, 0
      %s86 = sadd.s32 %s85, 1
      %s87 = scalar_select %p84, %s85, %s86
      %p90 = pneg %p84
      %p91 = scmp.eq.s32.totalorder %s28, 1
      %p92 = por %p90, %p91
      %p93 = scmp.ne.s32.totalorder %s85, %s88
      %p94 = scmp.eq.s32.totalorder %s28, 0
      %p95 = por %p93, %p94
      %p96 = scmp.ne.s32.totalorder %s85, %s88
      %p97 = scmp.eq.s32.totalorder %s33, 1
      %p98 = por %p96, %p97
      %p99 = scmp.ne.s32.totalorder %s88, %s89
      %p100 = scmp.eq.s32.totalorder %s33, 0
      %p101 = por %p99, %p100
      %p102 = scmp.ne.s32.totalorder %s88, %s89
      %p103 = scmp.eq.s32.totalorder %s34, 1
      %p104 = por %p102, %p103
      %p106 = scmp.ne.s32.totalorder %s89, %s105
      %p107 = scmp.eq.s32.totalorder %s34, 0
      %p108 = por %p106, %p107
      %s109 = ssub.s32 %s28, %s35
      %p110 = scmp.eq.s32.totalorder %s109, 0
      %s112 = sadd.s32 %s111, 1
      %s113 = scalar_select %p110, %s111, %s112
      %p116 = pneg %p110
      %p117 = scmp.eq.s32.totalorder %s28, 1
      %p118 = por %p116, %p117
      %p119 = scmp.ne.s32.totalorder %s111, %s114
      %p120 = scmp.eq.s32.totalorder %s28, 0
      %p121 = por %p119, %p120
      %p122 = scmp.ne.s32.totalorder %s111, %s114
      %p123 = scmp.eq.s32.totalorder %s33, 1
      %p124 = por %p122, %p123
      %p125 = scmp.ne.s32.totalorder %s114, %s115
      %p126 = scmp.eq.s32.totalorder %s33, 0
      %p127 = por %p125, %p126
      %p128 = scmp.ne.s32.totalorder %s114, %s115
      %p129 = scmp.eq.s32.totalorder %s34, 1
      %p130 = por %p128, %p129
      %p132 = scmp.ne.s32.totalorder %s115, %s131
      %p133 = scmp.eq.s32.totalorder %s34, 0
      %p134 = por %p132, %p133
      %s135 = ssub.s32 %s28, %s35
      %p136 = scmp.eq.s32.totalorder %s135, 0
      %s138 = sadd.s32 %s137, 1
      %s139 = scalar_select %p136, %s137, %s138
      %p142 = pneg %p136
      %p143 = scmp.eq.s32.totalorder %s28, 1
      %p144 = por %p142, %p143
      %p145 = scmp.ne.s32.totalorder %s137, %s140
      %p146 = scmp.eq.s32.totalorder %s28, 0
      %p147 = por %p145, %p146
      %p148 = scmp.ne.s32.totalorder %s137, %s140
      %p149 = scmp.eq.s32.totalorder %s33, 1
      %p150 = por %p148, %p149
      %p151 = scmp.ne.s32.totalorder %s140, %s141
      %p152 = scmp.eq.s32.totalorder %s33, 0
      %p153 = por %p151, %p152
      %p154 = scmp.ne.s32.totalorder %s140, %s141
      %p155 = scmp.eq.s32.totalorder %s34, 1
      %p156 = por %p154, %p155
      %p158 = scmp.ne.s32.totalorder %s141, %s157
      %p159 = scmp.eq.s32.totalorder %s34, 0
      %p160 = por %p158, %p159
      %s161 = ssub.s32 %s28, %s35
      %p162 = scmp.eq.s32.totalorder %s161, 0
      %s164 = sadd.s32 %s163, 1
      %s165 = scalar_select %p162, %s163, %s164
      %p168 = pneg %p162
      %p169 = scmp.eq.s32.totalorder %s28, 1
      %p170 = por %p168, %p169
      %p171 = scmp.ne.s32.totalorder %s163, %s166
      %p172 = scmp.eq.s32.totalorder %s28, 0
      %p173 = por %p171, %p172
      %p174 = scmp.ne.s32.totalorder %s163, %s166
      %p175 = scmp.eq.s32.totalorder %s33, 1
      %p176 = por %p174, %p175
      %p177 = scmp.ne.s32.totalorder %s166, %s167
      %p178 = scmp.eq.s32.totalorder %s33, 0
      %p179 = por %p177, %p178
      %p180 = scmp.ne.s32.totalorder %s166, %s167
      %p181 = scmp.eq.s32.totalorder %s34, 1
      %p182 = por %p180, %p181
      %p184 = scmp.ne.s32.totalorder %s167, %s183
      %p185 = scmp.eq.s32.totalorder %s34, 0
      %p186 = por %p184, %p185
      %s187 = ssub.s32 %s28, %s35
      %p188 = scmp.eq.s32.totalorder %s187, 0
      %s190 = sadd.s32 %s189, 1
      %s191 = scalar_select %p188, %s189, %s190
      %p194 = pneg %p188
      %p195 = scmp.eq.s32.totalorder %s28, 1
      %p196 = por %p194, %p195
      %p197 = scmp.ne.s32.totalorder %s189, %s192
      %p198 = scmp.eq.s32.totalorder %s28, 0
      %p199 = por %p197, %p198
      %p200 = scmp.ne.s32.totalorder %s189, %s192
      %p201 = scmp.eq.s32.totalorder %s33, 1
      %p202 = por %p200, %p201
      %p203 = scmp.ne.s32.totalorder %s192, %s193
      %p204 = scmp.eq.s32.totalorder %s33, 0
      %p205 = por %p203, %p204
      %p206 = scmp.ne.s32.totalorder %s192, %s193
      %p207 = scmp.eq.s32.totalorder %s34, 1
      %p208 = por %p206, %p207
      %p210 = scmp.ne.s32.totalorder %s193, %s209
      %p211 = scmp.eq.s32.totalorder %s34, 0
      %p212 = por %p210, %p211
      %s213 = ssub.s32 %s28, %s35
      %p214 = scmp.eq.s32.totalorder %s213, 0
      %s216 = sadd.s32 %s215, 1
      %s217 = scalar_select %p214, %s215, %s216
      %p220 = pneg %p214
      %p221 = scmp.eq.s32.totalorder %s28, 1
      %p222 = por %p220, %p221
      %p223 = scmp.ne.s32.totalorder %s215, %s218
      %p224 = scmp.eq.s32.totalorder %s28, 0
      %p225 = por %p223, %p224
      %p226 = scmp.ne.s32.totalorder %s215, %s218
      %p227 = scmp.eq.s32.totalorder %s33, 1
      %p228 = por %p226, %p227
      %p229 = scmp.ne.s32.totalorder %s218, %s219
      %p230 = scmp.eq.s32.totalorder %s33, 0
      %p231 = por %p229, %p230
      %p232 = scmp.ne.s32.totalorder %s218, %s219
      %p233 = scmp.eq.s32.totalorder %s34, 1
      %p234 = por %p232, %p233
      %p236 = scmp.ne.s32.totalorder %s219, %s235
      %p237 = scmp.eq.s32.totalorder %s34, 0
      %p238 = por %p236, %p237
      %s239 = ssub.s32 %s28, %s35
      %p240 = scmp.eq.s32.totalorder %s239, 0
      %s242 = sadd.s32 %s241, 1
      %s243 = scalar_select %p240, %s241, %s242
      %p246 = pneg %p240
      %p247 = scmp.eq.s32.totalorder %s28, 1
      %p248 = por %p246, %p247
      %p249 = scmp.ne.s32.totalorder %s241, %s244
      %p250 = scmp.eq.s32.totalorder %s28, 0
      %p251 = por %p249, %p250
      %p252 = scmp.ne.s32.totalorder %s241, %s244
      %p253 = scmp.eq.s32.totalorder %s33, 1
      %p254 = por %p252, %p253
      %p255 = scmp.ne.s32.totalorder %s244, %s245
      %p256 = scmp.eq.s32.totalorder %s33, 0
      %p257 = por %p255, %p256
      %p258 = scmp.ne.s32.totalorder %s244, %s245
      %p259 = scmp.eq.s32.totalorder %s34, 1
      %p260 = por %p258, %p259
      %p262 = scmp.ne.s32.totalorder %s245, %s261
      %p263 = scmp.eq.s32.totalorder %s34, 0
      %p264 = por %p262, %p263
      %s265 = ssub.s32 %s28, %s35
      %p266 = scmp.eq.s32.totalorder %s265, 0
      %s268 = sadd.s32 %s267, 1
      %s269 = scalar_select %p266, %s267, %s268
      %p272 = pneg %p266
      %p273 = scmp.eq.s32.totalorder %s28, 1
      %p274 = por %p272, %p273
      %p275 = scmp.ne.s32.totalorder %s267, %s270
      %p276 = scmp.eq.s32.totalorder %s28, 0
      %p277 = por %p275, %p276
      %p278 = scmp.ne.s32.totalorder %s267, %s270
      %p279 = scmp.eq.s32.totalorder %s33, 1
      %p280 = por %p278, %p279
      %p281 = scmp.ne.s32.totalorder %s270, %s271
      %p282 = scmp.eq.s32.totalorder %s33, 0
      %p283 = por %p281, %p282
      %p284 = scmp.ne.s32.totalorder %s270, %s271
      %p285 = scmp.eq.s32.totalorder %s34, 1
      %p286 = por %p284, %p285
      %p288 = scmp.ne.s32.totalorder %s271, %s287
      %p289 = scmp.eq.s32.totalorder %s34, 0
      %p290 = por %p288, %p289
      %s291 = ssub.s32 %s28, %s35
      %p292 = scmp.eq.s32.totalorder %s291, 0
      %s294 = sadd.s32 %s293, 1
      %s295 = scalar_select %p292, %s293, %s294
      %p298 = pneg %p292
      %p299 = scmp.eq.s32.totalorder %s28, 1
      %p300 = por %p298, %p299
      %p301 = scmp.ne.s32.totalorder %s293, %s296
      %p302 = scmp.eq.s32.totalorder %s28, 0
      %p303 = por %p301, %p302
      %p304 = scmp.ne.s32.totalorder %s293, %s296
      %p305 = scmp.eq.s32.totalorder %s33, 1
      %p306 = por %p304, %p305
      %p307 = scmp.ne.s32.totalorder %s296, %s297
      %p308 = scmp.eq.s32.totalorder %s33, 0
      %p309 = por %p307, %p308
      %p310 = scmp.ne.s32.totalorder %s296, %s297
      %p311 = scmp.eq.s32.totalorder %s34, 1
      %p312 = por %p310, %p311
      %p314 = scmp.ne.s32.totalorder %s297, %s313
      %p315 = scmp.eq.s32.totalorder %s34, 0
      %p316 = por %p314, %p315
      %s317 = ssub.s32 %s28, %s35
      %p318 = scmp.eq.s32.totalorder %s317, 0
      %s320 = sadd.s32 %s319, 1
      %s321 = scalar_select %p318, %s319, %s320
      %p324 = pneg %p318
      %p325 = scmp.eq.s32.totalorder %s28, 1
      %p326 = por %p324, %p325
      %p327 = scmp.ne.s32.totalorder %s319, %s322
      %p328 = scmp.eq.s32.totalorder %s28, 0
      %p329 = por %p327, %p328
      %p330 = scmp.ne.s32.totalorder %s319, %s322
      %p331 = scmp.eq.s32.totalorder %s33, 1
      %p332 = por %p330, %p331
      %p333 = scmp.ne.s32.totalorder %s322, %s323
      %p334 = scmp.eq.s32.totalorder %s33, 0
      %p335 = por %p333, %p334
      %p336 = scmp.ne.s32.totalorder %s322, %s323
      %p337 = scmp.eq.s32.totalorder %s34, 1
      %p338 = por %p336, %p337
      %p340 = scmp.ne.s32.totalorder %s323, %s339
      %p341 = scmp.eq.s32.totalorder %s34, 0
      %p342 = por %p340, %p341
      %s343 = ssub.s32 %s28, %s35
      %p344 = scmp.eq.s32.totalorder %s343, 0
      %s346 = sadd.s32 %s345, 1
      %s347 = scalar_select %p344, %s345, %s346
      %p350 = pneg %p344
      %p351 = scmp.eq.s32.totalorder %s28, 1
      %p352 = por %p350, %p351
      %p353 = scmp.ne.s32.totalorder %s345, %s348
      %p354 = scmp.eq.s32.totalorder %s28, 0
      %p355 = por %p353, %p354
      %p356 = scmp.ne.s32.totalorder %s345, %s348
      %p357 = scmp.eq.s32.totalorder %s33, 1
      %p358 = por %p356, %p357
      %p359 = scmp.ne.s32.totalorder %s348, %s349
      %p360 = scmp.eq.s32.totalorder %s33, 0
      %p361 = por %p359, %p360
      %p362 = scmp.ne.s32.totalorder %s348, %s349
      %p363 = scmp.eq.s32.totalorder %s34, 1
      %p364 = por %p362, %p363
      %p366 = scmp.ne.s32.totalorder %s349, %s365
      %p367 = scmp.eq.s32.totalorder %s34, 0
      %p368 = por %p366, %p367
      %s369 = ssub.s32 %s28, %s35
      %p370 = scmp.eq.s32.totalorder %s369, 0
      %s372 = sadd.s32 %s371, 1
      %s373 = scalar_select %p370, %s371, %s372
      %p376 = pneg %p370
      %p377 = scmp.eq.s32.totalorder %s28, 1
      %p378 = por %p376, %p377
      %p379 = scmp.ne.s32.totalorder %s371, %s374
      %p380 = scmp.eq.s32.totalorder %s28, 0
      %p381 = por %p379, %p380
      %p382 = scmp.ne.s32.totalorder %s371, %s374
      %p383 = scmp.eq.s32.totalorder %s33, 1
      %p384 = por %p382, %p383
      %p385 = scmp.ne.s32.totalorder %s374, %s375
      %p386 = scmp.eq.s32.totalorder %s33, 0
      %p387 = por %p385, %p386
      %p388 = scmp.ne.s32.totalorder %s374, %s375
      %p389 = scmp.eq.s32.totalorder %s34, 1
      %p390 = por %p388, %p389
      %p392 = scmp.ne.s32.totalorder %s375, %s391
      %p393 = scmp.eq.s32.totalorder %s34, 0
      %p394 = por %p392, %p393
      %s395 = ssub.s32 %s28, %s35
      %p396 = scmp.eq.s32.totalorder %s395, 0
      %s398 = sadd.s32 %s397, 1
      %s399 = scalar_select %p396, %s397, %s398
      %p402 = pneg %p396
      %p403 = scmp.eq.s32.totalorder %s28, 1
      %p404 = por %p402, %p403
      %p405 = scmp.ne.s32.totalorder %s397, %s400
      %p406 = scmp.eq.s32.totalorder %s28, 0
      %p407 = por %p405, %p406
      %p408 = scmp.ne.s32.totalorder %s397, %s400
      %p409 = scmp.eq.s32.totalorder %s33, 1
      %p410 = por %p408, %p409
      %p411 = scmp.ne.s32.totalorder %s400, %s401
      %p412 = scmp.eq.s32.totalorder %s33, 0
      %p413 = por %p411, %p412
      %p414 = scmp.ne.s32.totalorder %s400, %s401
      %p415 = scmp.eq.s32.totalorder %s34, 1
      %p416 = por %p414, %p415
      %p418 = scmp.ne.s32.totalorder %s401, %s417
      %p419 = scmp.eq.s32.totalorder %s34, 0
      %p420 = por %p418, %p419
      %s422 = sadd.s32 %s421, 1
      %p425 = scmp.eq.s32.totalorder %s28, 1
      %p426 = scmp.ne.s32.totalorder %s421, %s423
      %p427 = scmp.eq.s32.totalorder %s28, 0
      %p428 = por %p426, %p427
      %p429 = scmp.ne.s32.totalorder %s421, %s423
      %p430 = scmp.eq.s32.totalorder %s33, 1
      %p431 = por %p429, %p430
      %p432 = scmp.ne.s32.totalorder %s423, %s424
      %p433 = scmp.eq.s32.totalorder %s33, 0
      %p434 = por %p432, %p433
      %p435 = scmp.ne.s32.totalorder %s423, %s424
      %p436 = scmp.eq.s32.totalorder %s34, 1
      %p437 = por %p435, %p436
      %p439 = scmp.ne.s32.totalorder %s424, %s438
      %p440 = scmp.eq.s32.totalorder %s34, 0
      %p441 = por %p439, %p440
      %s443 = sadd.s32 %s442, 1
      %p446 = scmp.eq.s32.totalorder %s28, 1
      %p447 = scmp.ne.s32.totalorder %s442, %s444
      %p448 = scmp.eq.s32.totalorder %s28, 0
      %p449 = por %p447, %p448
      %p450 = scmp.ne.s32.totalorder %s442, %s444
      %p451 = scmp.eq.s32.totalorder %s33, 1
      %p452 = por %p450, %p451
      %p453 = scmp.ne.s32.totalorder %s444, %s445
      %p454 = scmp.eq.s32.totalorder %s33, 0
      %p455 = por %p453, %p454
      %p456 = scmp.ne.s32.totalorder %s444, %s445
      %p457 = scmp.eq.s32.totalorder %s34, 1
      %p458 = por %p456, %p457
      %p460 = scmp.ne.s32.totalorder %s445, %s459
      %p461 = scmp.eq.s32.totalorder %s34, 0
      %p462 = por %p460, %p461
      %s464 = sadd.s32 %s463, 1
      %p467 = scmp.eq.s32.totalorder %s28, 1
      %p468 = scmp.ne.s32.totalorder %s463, %s465
      %p469 = scmp.eq.s32.totalorder %s28, 0
      %p470 = por %p468, %p469
      %p471 = scmp.ne.s32.totalorder %s463, %s465
      %p472 = scmp.eq.s32.totalorder %s33, 1
      %p473 = por %p471, %p472
      %p474 = scmp.ne.s32.totalorder %s465, %s466
      %p475 = scmp.eq.s32.totalorder %s33, 0
      %p476 = por %p474, %p475
      %p477 = scmp.ne.s32.totalorder %s465, %s466
      %p478 = scmp.eq.s32.totalorder %s34, 1
      %p479 = por %p477, %p478
      %p481 = scmp.ne.s32.totalorder %s466, %s480
      %p482 = scmp.eq.s32.totalorder %s34, 0
      %p483 = por %p481, %p482
      %p484 = scmp.le.s32.totalorder 1, %s28
      %p485 = scmp.lt.s32.totalorder %s28, 3
      %p486 = pnand %p484, %p485
      %p487 = pneg %p486
      // Predicated region
      $region9: #{tpu_custom_call.1} parent=5 // pred_check
        _
      $region10: #{tpu_custom_call.1} parent=5 // pred_check_branch
        %489 = sbr.rel (%p486) target = $region12
      $region11: #{tpu_custom_call.1} parent=5 // pred_region
        %s490 = ssub.s32 %s28, 1
        // Predicated region
        $region13: #{tpu_custom_call.1} parent=11 // pred_check
          %p491 = pneg %p49
        $region14: #{tpu_custom_call.1} parent=11 // pred_check_branch
          %493 = sbr.rel (%p491) target = $region16
        $region15: #{tpu_custom_call.1} parent=11 // pred_region
          _
        $region16: #{tpu_custom_call.1} parent=11 // pred_fallthru
          _
        // Predicated region
        $region17: #{tpu_custom_call.1} parent=11 // pred_check
          %p494 = pneg %p434
        $region18: #{tpu_custom_call.1} parent=11 // pred_check_branch
          %496 = sbr.rel (%p494) target = $region20
        $region19: #{tpu_custom_call.1} parent=11 // pred_region
          _
        $region20: #{tpu_custom_call.1} parent=11 // pred_fallthru
          _
        // Predicated region
        $region21: #{tpu_custom_call.1} parent=11 // pred_check
          %p497 = pneg %p455
        $region22: #{tpu_custom_call.1} parent=11 // pred_check_branch
          %499 = sbr.rel (%p497) target = $region24
        $region23: #{tpu_custom_call.1} parent=11 // pred_region
          _
        $region24: #{tpu_custom_call.1} parent=11 // pred_fallthru
          _
      $region12: #{tpu_custom_call.1} parent=5 // pred_fallthru
        _
      %p500 = scmp.lt.s32.totalorder %s28, 2
      // Predicated region
      $region25: #{tpu_custom_call.1} parent=5 // pred_check
        %p501 = pneg %p500
      $region26: #{tpu_custom_call.1} parent=5 // pred_check_branch
        %503 = sbr.rel (%p501) target = $region28
      $region27: #{tpu_custom_call.1} parent=5 // pred_region
        // Predicated region
        $region29: #{tpu_custom_call.1} parent=27 // pred_check
          %p504 = pneg %p69
        $region30: #{tpu_custom_call.1} parent=27 // pred_check_branch
          %506 = sbr.rel (%p504) target = $region32
        $region31: #{tpu_custom_call.1} parent=27 // pred_region
          %p507 = scmp.lt.s32.totalorder %s28, 1
          %s508 = scalar_select %p507, %s28, 1
          %s509 = smul.addr %s508, 4
          %s510 = smul.addr %s509, 8
          %s511 = scalar_lea.vmem %s1, %s510
        $region32: #{tpu_custom_call.1} parent=27 // pred_fallthru
          _
        // Predicated region
        $region33: #{tpu_custom_call.1} parent=27 // pred_check
          %p512 = pneg %p95
        $region34: #{tpu_custom_call.1} parent=27 // pred_check_branch
          %514 = sbr.rel (%p512) target = $region36
        $region35: #{tpu_custom_call.1} parent=27 // pred_region
          %p515 = scmp.lt.s32.totalorder %s28, 1
          %s516 = scalar_select %p515, %s28, 1
          %s517 = scalar_lea.vmem %s2, %s516
        $region36: #{tpu_custom_call.1} parent=27 // pred_fallthru
          _
        // Predicated region
        $region37: #{tpu_custom_call.1} parent=27 // pred_check
          %p518 = pneg %p121
        $region38: #{tpu_custom_call.1} parent=27 // pred_check_branch
          %520 = sbr.rel (%p518) target = $region40
        $region39: #{tpu_custom_call.1} parent=27 // pred_region
          %p521 = scmp.lt.s32.totalorder %s28, 1
          %s522 = scalar_select %p521, %s28, 1
          %s523 = smul.addr %s522, 2
          %s524 = smul.addr %s523, 8
          %s525 = scalar_lea.vmem %s3, %s524
        $region40: #{tpu_custom_call.1} parent=27 // pred_fallthru
          _
        // Predicated region
        $region41: #{tpu_custom_call.1} parent=27 // pred_check
          %p526 = pneg %p147
        $region42: #{tpu_custom_call.1} parent=27 // pred_check_branch
          %528 = sbr.rel (%p526) target = $region44
        $region43: #{tpu_custom_call.1} parent=27 // pred_region
          %p529 = scmp.lt.s32.totalorder %s28, 1
          %s530 = scalar_select %p529, %s28, 1
          %s531 = scalar_lea.vmem %s4, %s530
        $region44: #{tpu_custom_call.1} parent=27 // pred_fallthru
          _
        // Predicated region
        $region45: #{tpu_custom_call.1} parent=27 // pred_check
          %p532 = pneg %p173
        $region46: #{tpu_custom_call.1} parent=27 // pred_check_branch
          %534 = sbr.rel (%p532) target = $region48
        $region47: #{tpu_custom_call.1} parent=27 // pred_region
          %p535 = scmp.lt.s32.totalorder %s28, 1
          %s536 = scalar_select %p535, %s28, 1
          %s537 = scalar_lea.vmem %s5, %s536
        $region48: #{tpu_custom_call.1} parent=27 // pred_fallthru
          _
        // Predicated region
        $region49: #{tpu_custom_call.1} parent=27 // pred_check
          %p538 = pneg %p199
        $region50: #{tpu_custom_call.1} parent=27 // pred_check_branch
          %540 = sbr.rel (%p538) target = $region52
        $region51: #{tpu_custom_call.1} parent=27 // pred_region
          %p541 = scmp.lt.s32.totalorder %s28, 1
          %s542 = scalar_select %p541, %s28, 1
          %s543 = scalar_lea.vmem %s6, %s542
        $region52: #{tpu_custom_call.1} parent=27 // pred_fallthru
          _
        // Predicated region
        $region53: #{tpu_custom_call.1} parent=27 // pred_check
          %p544 = pneg %p225
        $region54: #{tpu_custom_call.1} parent=27 // pred_check_branch
          %546 = sbr.rel (%p544) target = $region56
        $region55: #{tpu_custom_call.1} parent=27 // pred_region
          %p547 = scmp.lt.s32.totalorder %s28, 1
          %s548 = scalar_select %p547, %s28, 1
          %s549 = scalar_lea.vmem %s7, %s548
        $region56: #{tpu_custom_call.1} parent=27 // pred_fallthru
          _
        // Predicated region
        $region57: #{tpu_custom_call.1} parent=27 // pred_check
          %p550 = pneg %p251
        $region58: #{tpu_custom_call.1} parent=27 // pred_check_branch
          %552 = sbr.rel (%p550) target = $region60
        $region59: #{tpu_custom_call.1} parent=27 // pred_region
          %p553 = scmp.lt.s32.totalorder %s28, 1
          %s554 = scalar_select %p553, %s28, 1
          %s555 = scalar_lea.vmem %s8, %s554
        $region60: #{tpu_custom_call.1} parent=27 // pred_fallthru
          _
        // Predicated region
        $region61: #{tpu_custom_call.1} parent=27 // pred_check
          %p556 = pneg %p277
        $region62: #{tpu_custom_call.1} parent=27 // pred_check_branch
          %558 = sbr.rel (%p556) target = $region64
        $region63: #{tpu_custom_call.1} parent=27 // pred_region
          %p559 = scmp.lt.s32.totalorder %s28, 1
          %s560 = scalar_select %p559, %s28, 1
          %s561 = smul.addr %s560, 8
          %s562 = smul.addr %s561, 8
          %s563 = scalar_lea.vmem %s9, %s562
        $region64: #{tpu_custom_call.1} parent=27 // pred_fallthru
          _
        // Predicated region
        $region65: #{tpu_custom_call.1} parent=27 // pred_check
          %p564 = pneg %p303
        $region66: #{tpu_custom_call.1} parent=27 // pred_check_branch
          %566 = sbr.rel (%p564) target = $region68
        $region67: #{tpu_custom_call.1} parent=27 // pred_region
          %p567 = scmp.lt.s32.totalorder %s28, 1
          %s568 = scalar_select %p567, %s28, 1
          %s569 = smul.addr %s568, 2
          %s570 = scalar_lea.vmem %s10, %s569
        $region68: #{tpu_custom_call.1} parent=27 // pred_fallthru
          _
        // Predicated region
        $region69: #{tpu_custom_call.1} parent=27 // pred_check
          %p571 = pneg %p329
        $region70: #{tpu_custom_call.1} parent=27 // pred_check_branch
          %573 = sbr.rel (%p571) target = $region72
        $region71: #{tpu_custom_call.1} parent=27 // pred_region
          %s574 = sand.u32 %s319, 1
          %s575 = scalar_lea.sflag [#allocation5], %s574
          %s576 = sand.u32 %s319, 1
          %s577 = smul.addr %s576, 160
          %s578 = scalar_lea.vmem [#allocation4], %s577
          %580 = vsyncadd %s575, 0
          %s581 = smul.addr %s28, 20
          %s582 = smul.addr %s581, 8
          %s583 = scalar_lea.hbm %s11, %s582
          %s584 = sshll.u32 %s583, 4
          %s585 = int_to_ptr.hbm [resolvable:$true] %s584
          %s586 = sshll.u32 %s578, 4
          %s587 = int_to_ptr.vmem [resolvable:$true] %s586
          %592 = dma.hbm_to_vmem [thread:$0]  %s585, 2560, %s587, %s575, 128, 128, 8
        $region72: #{tpu_custom_call.1} parent=27 // pred_fallthru
          _
        // Predicated region
        $region73: #{tpu_custom_call.1} parent=27 // pred_check
          %p593 = pneg %p355
        $region74: #{tpu_custom_call.1} parent=27 // pred_check_branch
          %595 = sbr.rel (%p593) target = $region76
        $region75: #{tpu_custom_call.1} parent=27 // pred_region
          %p596 = scmp.lt.s32.totalorder %s28, 1
          %s597 = scalar_select %p596, %s28, 1
          %s598 = scalar_lea.vmem %s12, %s597
        $region76: #{tpu_custom_call.1} parent=27 // pred_fallthru
          _
        // Predicated region
        $region77: #{tpu_custom_call.1} parent=27 // pred_check
          %p599 = pneg %p381
        $region78: #{tpu_custom_call.1} parent=27 // pred_check_branch
          %601 = sbr.rel (%p599) target = $region80
        $region79: #{tpu_custom_call.1} parent=27 // pred_region
          %p602 = scmp.lt.s32.totalorder %s28, 1
          %s603 = scalar_select %p602, %s28, 1
          %s604 = smul.addr %s603, 12
          %s605 = smul.addr %s604, 8
          %s606 = scalar_lea.vmem %s13, %s605
        $region80: #{tpu_custom_call.1} parent=27 // pred_fallthru
          _
        // Predicated region
        $region81: #{tpu_custom_call.1} parent=27 // pred_check
          %p607 = pneg %p407
        $region82: #{tpu_custom_call.1} parent=27 // pred_check_branch
          %609 = sbr.rel (%p607) target = $region84
        $region83: #{tpu_custom_call.1} parent=27 // pred_region
          %p610 = scmp.lt.s32.totalorder %s28, 1
          %s611 = scalar_select %p610, %s28, 1
          %s612 = scalar_lea.vmem %s14, %s611
        $region84: #{tpu_custom_call.1} parent=27 // pred_fallthru
          _
      $region28: #{tpu_custom_call.1} parent=5 // pred_fallthru
        _
      %p613 = scmp.le.s32.totalorder 1, %s28
      %p614 = scmp.lt.s32.totalorder %s28, 3
      %p615 = pnand %p613, %p614
      %p616 = pneg %p615
      // Predicated region
      $region85: #{tpu_custom_call.1} parent=5 // pred_check
        _
      $region86: #{tpu_custom_call.1} parent=5 // pred_check_branch
        %618 = sbr.rel (%p615) target = $region88
      $region87: #{tpu_custom_call.1} parent=5 // pred_region
        %s619 = ssub.s32 %s28, 1
        %s620 = sand.u32 %s322, 1
        %s621 = scalar_lea.sflag [#allocation5], %s620
        %s622 = sand.u32 %s322, 1
        %s623 = smul.addr %s622, 160
        %s624 = scalar_lea.vmem [#allocation4], %s623
        // Predicated region
        $region89: #{tpu_custom_call.1} parent=87 // pred_check
          %p625 = pneg %p335
        $region90: #{tpu_custom_call.1} parent=87 // pred_check_branch
          %627 = sbr.rel (%p625) target = $region92
        $region91: #{tpu_custom_call.1} parent=87 // pred_region
          %629 = dma.done %s621, 2560
        $region92: #{tpu_custom_call.1} parent=87 // pred_fallthru
          _
        %p630 = pneg %p49
        %p631 = pneg %p46
        %p632 = scmp.lt.s32.totalorder %s33, 1
        %s633 = scalar_select %p632, %s33, 1
        %s634 = smul.addr %s633, 4
        %s635 = smul.addr %s634, 8
        %s636 = scalar_lea.vmem %s1, %s635
        %p637 = pneg %p75
        %p638 = pneg %p72
        %p639 = scmp.lt.s32.totalorder %s33, 1
        %s640 = scalar_select %p639, %s33, 1
        %s641 = scalar_lea.vmem %s2, %s640
        %p642 = pneg %p101
        %p643 = pneg %p98
        %p644 = scmp.lt.s32.totalorder %s33, 1
        %s645 = scalar_select %p644, %s33, 1
        %s646 = smul.addr %s645, 2
        %s647 = smul.addr %s646, 8
        %s648 = scalar_lea.vmem %s3, %s647
        %p649 = pneg %p127
        %p650 = pneg %p124
        %p651 = scmp.lt.s32.totalorder %s33, 1
        %s652 = scalar_select %p651, %s33, 1
        %s653 = scalar_lea.vmem %s4, %s652
        %p654 = pneg %p153
        %p655 = pneg %p150
        %p656 = scmp.lt.s32.totalorder %s33, 1
        %s657 = scalar_select %p656, %s33, 1
        %s658 = scalar_lea.vmem %s5, %s657
        %p659 = pneg %p179
        %p660 = pneg %p176
        %p661 = scmp.lt.s32.totalorder %s33, 1
        %s662 = scalar_select %p661, %s33, 1
        %s663 = scalar_lea.vmem %s6, %s662
        %p664 = pneg %p205
        %p665 = pneg %p202
        %p666 = scmp.lt.s32.totalorder %s33, 1
        %s667 = scalar_select %p666, %s33, 1
        %s668 = scalar_lea.vmem %s7, %s667
        %p669 = pneg %p231
        %p670 = pneg %p228
        %p671 = scmp.lt.s32.totalorder %s33, 1
        %s672 = scalar_select %p671, %s33, 1
        %s673 = scalar_lea.vmem %s8, %s672
        %p674 = pneg %p257
        %p675 = pneg %p254
        %p676 = scmp.lt.s32.totalorder %s33, 1
        %s677 = scalar_select %p676, %s33, 1
        %s678 = smul.addr %s677, 8
        %s679 = smul.addr %s678, 8
        %s680 = scalar_lea.vmem %s9, %s679
        %p681 = pneg %p283
        %p682 = pneg %p280
        %p683 = scmp.lt.s32.totalorder %s33, 1
        %s684 = scalar_select %p683, %s33, 1
        %s685 = smul.addr %s684, 2
        %s686 = scalar_lea.vmem %s10, %s685
        %p687 = pneg %p309
        %p688 = pneg %p306
        %s689 = sand.u32 %s322, 1
        %s690 = scalar_lea.sflag [#allocation5], %s689
        %s691 = sand.u32 %s322, 1
        %s692 = smul.addr %s691, 160
        %s693 = scalar_lea.vmem [#allocation4], %s692
        %p694 = pneg %p335
        %p695 = pneg %p332
        %p696 = scmp.lt.s32.totalorder %s33, 1
        %s697 = scalar_select %p696, %s33, 1
        %s698 = scalar_lea.vmem %s12, %s697
        %p699 = pneg %p361
        %p700 = pneg %p358
        %p701 = scmp.lt.s32.totalorder %s33, 1
        %s702 = scalar_select %p701, %s33, 1
        %s703 = smul.addr %s702, 12
        %s704 = smul.addr %s703, 8
        %s705 = scalar_lea.vmem %s13, %s704
        %p706 = pneg %p387
        %p707 = pneg %p384
        %p708 = scmp.lt.s32.totalorder %s33, 1
        %s709 = scalar_select %p708, %s33, 1
        %s710 = scalar_lea.vmem %s14, %s709
        %p711 = pneg %p413
        %p712 = pneg %p410
        %p713 = pneg %p434
        %p714 = pneg %p431
        %p715 = pneg %p455
        %p716 = pneg %p452
        %p717 = pneg %p476
        %p718 = pneg %p473
        %p719 = scmp.lt.s32.totalorder %s33, 1
        %s720 = scalar_select %p719, %s33, 1
        %s721 = smul.addr %s720, 4
        %s722 = smul.addr %s721, 8
        %s723 = scalar_lea.vmem %s1, %s722
        %p724 = scmp.lt.s32.totalorder %s33, 1
        %s725 = scalar_select %p724, %s33, 1
        %s726 = scalar_lea.vmem %s2, %s725
        %p727 = scmp.lt.s32.totalorder %s33, 1
        %s728 = scalar_select %p727, %s33, 1
        %s729 = smul.addr %s728, 2
        %s730 = smul.addr %s729, 8
        %s731 = scalar_lea.vmem %s3, %s730
        %p732 = scmp.lt.s32.totalorder %s33, 1
        %s733 = scalar_select %p732, %s33, 1
        %s734 = scalar_lea.vmem %s4, %s733
        %p735 = scmp.lt.s32.totalorder %s33, 1
        %s736 = scalar_select %p735, %s33, 1
        %s737 = scalar_lea.vmem %s5, %s736
        %p738 = scmp.lt.s32.totalorder %s33, 1
        %s739 = scalar_select %p738, %s33, 1
        %s740 = scalar_lea.vmem %s6, %s739
        %p741 = scmp.lt.s32.totalorder %s33, 1
        %s742 = scalar_select %p741, %s33, 1
        %s743 = scalar_lea.vmem %s7, %s742
        %p744 = scmp.lt.s32.totalorder %s33, 1
        %s745 = scalar_select %p744, %s33, 1
        %s746 = scalar_lea.vmem %s8, %s745
        %p747 = scmp.lt.s32.totalorder %s33, 1
        %s748 = scalar_select %p747, %s33, 1
        %s749 = smul.addr %s748, 8
        %s750 = smul.addr %s749, 8
        %s751 = scalar_lea.vmem %s9, %s750
        %p752 = scmp.lt.s32.totalorder %s33, 1
        %s753 = scalar_select %p752, %s33, 1
        %s754 = smul.addr %s753, 2
        %s755 = scalar_lea.vmem %s10, %s754
        %p756 = scmp.lt.s32.totalorder %s33, 1
        %s757 = scalar_select %p756, %s33, 1
        %s758 = scalar_lea.vmem %s12, %s757
        %p759 = scmp.lt.s32.totalorder %s33, 1
        %s760 = scalar_select %p759, %s33, 1
        %s761 = smul.addr %s760, 12
        %s762 = smul.addr %s761, 8
        %s763 = scalar_lea.vmem %s13, %s762
        %p764 = scmp.lt.s32.totalorder %s33, 1
        %s765 = scalar_select %p764, %s33, 1
        %s766 = scalar_lea.vmem %s14, %s765
        %p767 = scmp.eq.s32.totalorder %s33, 0
        // Predicated region
        $region93: #{tpu_custom_call.1} parent=87 // pred_check
          %p768 = pneg %p767
        $region94: #{tpu_custom_call.1} parent=87 // pred_check_branch
          %770 = sbr.rel (%p768) target = $region96
        $region95: #{tpu_custom_call.1} parent=87 // pred_region
          %v771 = vld [vmem:[%s0] sm:$0xff]
          %v772 = vld [vmem:[%s0 + $0x8] sm:$0xff]
          %vm773 = vcmask 261120
          %774 = vst.msk [vmem:[#allocation2] sm:$0xff] %vm773, %v771
          %775 = vst.msk [vmem:[#allocation2 + $0x8] sm:$0xff] %vm773, %v772
        $region96: #{tpu_custom_call.1} parent=87 // pred_fallthru
          _
        %v776 = vld [vmem:[#allocation2] sm:$0xff]
        %v777 = vld [vmem:[#allocation2 + $0x8] sm:$0xff]
        %v778 = vld [vmem:[%s723] sm:$0xff]
        %v779 = vld [vmem:[%s723 + $0x8] sm:$0xff]
        %v780 = vld [vmem:[%s723 + $0x10] sm:$0xff]
        %v781 = vld [vmem:[%s723 + $0x18] sm:$0xff]
        %v782 = vld [vmem:[%s726] sm:$0x1]
        %v784 = vperm.slane %v782, 0
        %vm786 = vcmask 261120
        %v788 = vsel %vm786, %v776, 0
        %v791 = vsel %vm786, %v777, 0
        %793 = vmatpush.msra.mxu0 0.0
        %794 = vmatpush.msra.mxu0 0.0
        %795 = vmatpush.msra.mxu0 0.0
        %796 = vmatpush.msra.mxu0 0.0
        %797 = vmatpush.msra.mxu0 0.0
        %798 = vmatpush.msra.mxu0 0.0
        %799 = vmatpush.msra.mxu0 0.0
        %800 = vmatpush.msra.mxu0 0.0
        %801 = vmatpush.msra.mxu0 0.0
        %802 = vmatpush.msra.mxu0 0.0
        %803 = vmatpush.msra.mxu0 0.0
        %804 = vmatpush.msra.mxu0 0.0
        %805 = vmatpush.msra.mxu0 %v781
        %806 = vmatpush.msra.mxu0 %v780
        %807 = vmatpush.msra.mxu0 %v779
        %808 = vmatpush.msra.mxu0 %v778
        %809 = vmatmul.f32.gmra.mxu0 %v788
        %v810 = vpop.f32.mrf.mxu0
        %v811 = vadd.f32 %v784, %v810
        %812 = vmatmul.f32.gmra.mxu0 %v791
        %v813 = vpop.f32.mrf.mxu0
        %v814 = vadd.f32 %v784, %v813
        %815 = vdwg.mxu0
        %vm816 = vcmask 130048
        %v817 = vsel %vm816, %v811, 0.0
        %v818 = vrot.slane %v817, 4
        %v819 = vadd.f32 %v817, %v818
        %v820 = vrot.slane %v819, 2
        %v821 = vadd.f32 %v819, %v820
        %v822 = vrot.slane %v821, 1
        %v823 = vadd.f32 %v821, %v822
        %v824 = vsel %vm816, %v814, 0.0
        %v825 = vrot.slane %v824, 4
        %v826 = vadd.f32 %v824, %v825
        %v827 = vrot.slane %v826, 2
        %v828 = vadd.f32 %v826, %v827
        %v829 = vrot.slane %v828, 1
        %v830 = vadd.f32 %v828, %v829
        %v831 = vld [vmem:[%s731] sm:$0xff]
        %v832 = vld [vmem:[%s731 + $0x8] sm:$0xff]
        %v833 = vld [vmem:[%s734] sm:$0x1]
        %v835 = vperm.slane %v833, 0
        %vm839 = vcmask 1041409
        %v840 = vsel %vm839, %v830, %v823
        %v841 = vsel %vm816, %v840, 0
        %843 = vmatpush.msra.mxu0 0.0
        %844 = vmatpush.msra.mxu0 0.0
        %845 = vmatpush.msra.mxu0 0.0
        %846 = vmatpush.msra.mxu0 0.0
        %847 = vmatpush.msra.mxu0 0.0
        %848 = vmatpush.msra.mxu0 0.0
        %849 = vmatpush.msra.mxu0 0.0
        %850 = vmatpush.msra.mxu0 0.0
        %851 = vmatpush.msra.mxu0 0.0
        %852 = vmatpush.msra.mxu0 0.0
        %853 = vmatpush.msra.mxu0 0.0
        %854 = vmatpush.msra.mxu0 0.0
        %855 = vmatpush.msra.mxu0 0.0
        %856 = vmatpush.msra.mxu0 0.0
        %857 = vmatpush.msra.mxu0 %v832
        %858 = vmatpush.msra.mxu0 %v831
        %859 = vmatmul.f32.gmra.mxu0 %v841
        %v860 = vpop.f32.mrf.mxu0
        %v861 = vadd.f32 %v835, %v860
        %862 = vdwg.mxu0
        %v864 = vrot.slane %v861, 1
        %v865 = vperm.slane %v861, 0
        %v866 = vperm.slane %v864, 0
        %v869 = vadd.f32 %v776, %v865
        %v870 = vadd.f32 %v777, %v866
        %v871 = vld [vmem:[%s737] sm:$0x1]
        %v872 = vld [vmem:[%s740] sm:$0x1]
        %v873 = vsel %vm786, %v869, 0.0
        %v874 = vsel %vm786, %v870, 0.0
        %v875 = vadd.f32 %v873, %v874
        %v876 = vrot.slane %v875, 4
        %v877 = vadd.f32 %v875, %v876
        %v878 = vrot.slane %v877, 2
        %v879 = vadd.f32 %v877, %v878
        %v880 = vrot.slane %v879, 1
        %v881 = vadd.f32 %v879, %v880
        %v882 = vrcp.pop 16.0
        %v883 = vmul.f32 16.0, %v882
        %v884 = vsub.f32 1.0, %v883
        %v885 = vmul.f32 %v882, %v884
        %v886 = vadd.f32 %v882, %v885
        %vm887 = vweird.f32 %v882
        %v888 = vsel %vm887, %v882, %v886
        %v889 = vmul.f32 %v881, %v888
        %v890 = vsub.f32 %v869, %v889
        %v891 = vsub.f32 %v870, %v889
        %v892 = vmul.f32 %v890, %v890
        %v893 = vmul.f32 %v891, %v891
        %v894 = vsel %vm786, %v892, 0.0
        %v895 = vsel %vm786, %v893, 0.0
        %v896 = vadd.f32 %v894, %v895
        %v897 = vrot.slane %v896, 4
        %v898 = vadd.f32 %v896, %v897
        %v899 = vrot.slane %v898, 2
        %v900 = vadd.f32 %v898, %v899
        %v901 = vrot.slane %v900, 1
        %v902 = vadd.f32 %v900, %v901
        %v903 = vmul.f32 %v902, %v888
        %v904 = vadd.f32 %v903, 1e-05
        %v905 = vrsqrt.pop %v904
        %v906 = vmul.f32 %v905, %v904
        %v907 = vmul.f32 %v906, %v905
        %v908 = vmul.f32 0.5, %v907
        %v909 = vsub.f32 1.5, %v908
        %v910 = vmul.f32 %v905, %v909
        %vm911 = vweird.f32 %v904
        %vm912 = vweird.f32 %v905
        %vm913 = vmor %vm911, %vm912
        %v914 = vsel %vm913, %v905, %v910
        %v915 = vmul.f32 %v890, %v914
        %v916 = vmul.f32 %v891, %v914
        %v918 = vperm.slane %v871, 0
        %v920 = vmul.f32 %v915, %v918
        %v921 = vmul.f32 %v916, %v918
        %v923 = vperm.slane %v872, 0
        %v925 = vadd.f32 %v920, %v923
        %v926 = vadd.f32 %v921, %v923
        %v927 = vld [vmem:[%s751] sm:$0xff]
        %v928 = vld [vmem:[%s751 + $0x8] sm:$0xff]
        %v929 = vld [vmem:[%s751 + $0x10] sm:$0xff]
        %v930 = vld [vmem:[%s751 + $0x18] sm:$0xff]
        %v931 = vld [vmem:[%s751 + $0x20] sm:$0xff]
        %v932 = vld [vmem:[%s751 + $0x28] sm:$0xff]
        %v933 = vld [vmem:[%s751 + $0x30] sm:$0xff]
        %v934 = vld [vmem:[%s751 + $0x38] sm:$0xff]
        %v935 = vld [vmem:[%s755] sm:$0x3]
        %v937 = vperm.slane %v935, 0
        %v938 = vperm.slane %v935, 1
        %v942 = vsel %vm786, %v925, 0
        %v945 = vsel %vm786, %v926, 0
        %947 = vmatpush.msra.mxu0 0.0
        %948 = vmatpush.msra.mxu0 0.0
        %949 = vmatpush.msra.mxu0 0.0
        %950 = vmatpush.msra.mxu0 0.0
        %951 = vmatpush.msra.mxu0 0.0
        %952 = vmatpush.msra.mxu0 0.0
        %953 = vmatpush.msra.mxu0 0.0
        %954 = vmatpush.msra.mxu0 0.0
        %955 = vmatpush.msra.mxu0 0.0
        %956 = vmatpush.msra.mxu0 0.0
        %957 = vmatpush.msra.mxu0 0.0
        %958 = vmatpush.msra.mxu0 0.0
        %959 = vmatpush.msra.mxu0 %v933
        %960 = vmatpush.msra.mxu0 %v931
        %961 = vmatpush.msra.mxu0 %v929
        %962 = vmatpush.msra.mxu0 %v927
        %963 = vmatmul.f32.gmra.mxu0 %v942
        %v964 = vpop.f32.mrf.mxu0
        %v965 = vadd.f32 %v937, %v964
        %966 = vmatmul.f32.gmra.mxu0 %v945
        %v967 = vpop.f32.mrf.mxu0
        %v968 = vadd.f32 %v937, %v967
        %969 = vdwg.mxu0
        %970 = vmatpush.msra.mxu0 0.0
        %971 = vmatpush.msra.mxu0 0.0
        %972 = vmatpush.msra.mxu0 0.0
        %973 = vmatpush.msra.mxu0 0.0
        %974 = vmatpush.msra.mxu0 0.0
        %975 = vmatpush.msra.mxu0 0.0
        %976 = vmatpush.msra.mxu0 0.0
        %977 = vmatpush.msra.mxu0 0.0
        %978 = vmatpush.msra.mxu0 0.0
        %979 = vmatpush.msra.mxu0 0.0
        %980 = vmatpush.msra.mxu0 0.0
        %981 = vmatpush.msra.mxu0 0.0
        %982 = vmatpush.msra.mxu0 %v934
        %983 = vmatpush.msra.mxu0 %v932
        %984 = vmatpush.msra.mxu0 %v930
        %985 = vmatpush.msra.mxu0 %v928
        %986 = vmatmul.f32.gmra.mxu0 %v942
        %v987 = vpop.f32.mrf.mxu0
        %v988 = vadd.f32 %v938, %v987
        %989 = vmatmul.f32.gmra.mxu0 %v945
        %v990 = vpop.f32.mrf.mxu0
        %v991 = vadd.f32 %v938, %v990
        %992 = vdwg.mxu0
        %v993 = vxor.u32 %v965, 2147483648
        %v994 = vxor.u32 %v988, 2147483648
        %v995 = vxor.u32 %v968, 2147483648
        %v996 = vxor.u32 %v991, 2147483648
        %v997 = vmul.f32 %v993, 1.442695
        %v998 = vpow.pop %v997
        %v999 = vmul.f32 %v994, 1.442695
        %v1000 = vpow.pop %v999
        %v1001 = vmul.f32 %v995, 1.442695
        %v1002 = vpow.pop %v1001
        %v1003 = vmul.f32 %v996, 1.442695
        %v1004 = vpow.pop %v1003
        %v1005 = vadd.f32 %v998, 1.0
        %v1006 = vadd.f32 %v1000, 1.0
        %v1007 = vadd.f32 %v1002, 1.0
        %v1008 = vadd.f32 %v1004, 1.0
        %v1009 = vrcp.pop %v1005
        %v1010 = vmul.f32 %v1005, %v1009
        %v1011 = vsub.f32 1.0, %v1010
        %v1012 = vmul.f32 %v1009, %v1011
        %v1013 = vadd.f32 %v1009, %v1012
        %vm1014 = vweird.f32 %v1005
        %vm1015 = vweird.f32 %v1009
        %vm1016 = vmor %vm1014, %vm1015
        %v1017 = vsel %vm1016, %v1009, %v1013
        %v1018 = vand.u32 2147483647, %v1005
        %vm1019 = vcmp.eq.f32.partialorder %v1018, 8.507059e+37
        %v1020 = vand.u32 %v1005, 2147483648
        %v1021 = vor.u32 1.1754944e-38, %v1020
        %v1022 = vsel %vm1019, %v1021, %v1017
        %v1023 = vmul.f32 1.0, %v1022
        %v1024 = vrcp.pop %v1006
        %v1025 = vmul.f32 %v1006, %v1024
        %v1026 = vsub.f32 1.0, %v1025
        %v1027 = vmul.f32 %v1024, %v1026
        %v1028 = vadd.f32 %v1024, %v1027
        %vm1029 = vweird.f32 %v1006
        %vm1030 = vweird.f32 %v1024
        %vm1031 = vmor %vm1029, %vm1030
        %v1032 = vsel %vm1031, %v1024, %v1028
        %v1033 = vand.u32 2147483647, %v1006
        %vm1034 = vcmp.eq.f32.partialorder %v1033, 8.507059e+37
        %v1035 = vand.u32 %v1006, 2147483648
        %v1036 = vor.u32 1.1754944e-38, %v1035
        %v1037 = vsel %vm1034, %v1036, %v1032
        %v1038 = vmul.f32 1.0, %v1037
        %v1039 = vrcp.pop %v1007
        %v1040 = vmul.f32 %v1007, %v1039
        %v1041 = vsub.f32 1.0, %v1040
        %v1042 = vmul.f32 %v1039, %v1041
        %v1043 = vadd.f32 %v1039, %v1042
        %vm1044 = vweird.f32 %v1007
        %vm1045 = vweird.f32 %v1039
        %vm1046 = vmor %vm1044, %vm1045
        %v1047 = vsel %vm1046, %v1039, %v1043
        %v1048 = vand.u32 2147483647, %v1007
        %vm1049 = vcmp.eq.f32.partialorder %v1048, 8.507059e+37
        %v1050 = vand.u32 %v1007, 2147483648
        %v1051 = vor.u32 1.1754944e-38, %v1050
        %v1052 = vsel %vm1049, %v1051, %v1047
        %v1053 = vmul.f32 1.0, %v1052
        %v1054 = vrcp.pop %v1008
        %v1055 = vmul.f32 %v1008, %v1054
        %v1056 = vsub.f32 1.0, %v1055
        %v1057 = vmul.f32 %v1054, %v1056
        %v1058 = vadd.f32 %v1054, %v1057
        %vm1059 = vweird.f32 %v1008
        %vm1060 = vweird.f32 %v1054
        %vm1061 = vmor %vm1059, %vm1060
        %v1062 = vsel %vm1061, %v1054, %v1058
        %v1063 = vand.u32 2147483647, %v1008
        %vm1064 = vcmp.eq.f32.partialorder %v1063, 8.507059e+37
        %v1065 = vand.u32 %v1008, 2147483648
        %v1066 = vor.u32 1.1754944e-38, %v1065
        %v1067 = vsel %vm1064, %v1066, %v1062
        %v1068 = vmul.f32 1.0, %v1067
        %v1069 = vld [vmem:[%s624] sm:$0xff]
        %v1070 = vld [vmem:[%s624 + $0x8] sm:$0xff]
        %v1071 = vld [vmem:[%s624 + $0x10] sm:$0xff]
        %v1072 = vld [vmem:[%s624 + $0x18] sm:$0xff]
        %v1073 = vld [vmem:[%s624 + $0x20] sm:$0xff]
        %v1074 = vld [vmem:[%s624 + $0x28] sm:$0xff]
        %v1075 = vld [vmem:[%s624 + $0x30] sm:$0xff]
        %v1076 = vld [vmem:[%s624 + $0x38] sm:$0xff]
        %v1077 = vld [vmem:[%s624 + $0x40] sm:$0xff]
        %v1078 = vld [vmem:[%s624 + $0x48] sm:$0xff]
        %v1079 = vld [vmem:[%s624 + $0x50] sm:$0xff]
        %v1080 = vld [vmem:[%s624 + $0x58] sm:$0xff]
        %v1081 = vld [vmem:[%s624 + $0x60] sm:$0xff]
        %v1082 = vld [vmem:[%s624 + $0x68] sm:$0xff]
        %v1083 = vld [vmem:[%s624 + $0x70] sm:$0xff]
        %v1084 = vld [vmem:[%s624 + $0x78] sm:$0xff]
        %v1085 = vld [vmem:[%s624 + $0x80] sm:$0xff]
        %v1086 = vld [vmem:[%s624 + $0x88] sm:$0xff]
        %v1087 = vld [vmem:[%s624 + $0x90] sm:$0xff]
        %v1088 = vld [vmem:[%s624 + $0x98] sm:$0xff]
        %v1089 = vld [vmem:[%s758] sm:$0x1]
        %v1091 = vperm.slane %v1089, 0
        %v1094 = vsel %vm786, %v1038, 0
        %v1097 = vsel %vm786, %v1068, 0
        %1099 = vmatpush.msra.mxu0 %v1084
        %1100 = vmatpush.msra.mxu0 %v1083
        %1101 = vmatpush.msra.mxu0 %v1082
        %1102 = vmatpush.msra.mxu0 %v1081
        %1103 = vmatpush.msra.mxu0 %v1080
        %1104 = vmatpush.msra.mxu0 %v1079
        %1105 = vmatpush.msra.mxu0 %v1078
        %1106 = vmatpush.msra.mxu0 %v1077
        %1107 = vmatpush.msra.mxu0 %v1076
        %1108 = vmatpush.msra.mxu0 %v1075
        %1109 = vmatpush.msra.mxu0 %v1074
        %1110 = vmatpush.msra.mxu0 %v1073
        %1111 = vmatpush.msra.mxu0 %v1072
        %1112 = vmatpush.msra.mxu0 %v1071
        %1113 = vmatpush.msra.mxu0 %v1070
        %1114 = vmatpush.msra.mxu0 %v1069
        %1115 = vmatmul.f32.gmra.mxu0 %v1023
        %v1116 = vpop.f32.mrf.mxu0
        %v1117 = vadd.f32 %v1091, %v1116
        %1118 = vmatmul.f32.gmra.mxu0 %v1053
        %v1119 = vpop.f32.mrf.mxu0
        %v1120 = vadd.f32 %v1091, %v1119
        %1121 = vdwg.mxu0
        %1122 = vmatpush.msra.mxu0 0.0
        %1123 = vmatpush.msra.mxu0 0.0
        %1124 = vmatpush.msra.mxu0 0.0
        %1125 = vmatpush.msra.mxu0 0.0
        %1126 = vmatpush.msra.mxu0 0.0
        %1127 = vmatpush.msra.mxu0 0.0
        %1128 = vmatpush.msra.mxu0 0.0
        %1129 = vmatpush.msra.mxu0 0.0
        %1130 = vmatpush.msra.mxu0 0.0
        %1131 = vmatpush.msra.mxu0 0.0
        %1132 = vmatpush.msra.mxu0 0.0
        %1133 = vmatpush.msra.mxu0 0.0
        %1134 = vmatpush.msra.mxu0 %v1088
        %1135 = vmatpush.msra.mxu0 %v1087
        %1136 = vmatpush.msra.mxu0 %v1086
        %1137 = vmatpush.msra.mxu0 %v1085
        %1138 = vmatmul.f32.gmra.mxu0 %v1094
        %v1139 = vpop.f32.mrf.mxu0
        %v1140 = vadd.f32 %v1117, %v1139
        %1141 = vmatmul.f32.gmra.mxu0 %v1097
        %v1142 = vpop.f32.mrf.mxu0
        %v1143 = vadd.f32 %v1120, %v1142
        %1144 = vdwg.mxu0
        %v1145 = vxor.u32 %v1140, 2147483648
        %v1146 = vxor.u32 %v1143, 2147483648
        %v1147 = vmul.f32 %v1145, 1.442695
        %v1148 = vpow.pop %v1147
        %v1149 = vmul.f32 %v1146, 1.442695
        %v1150 = vpow.pop %v1149
        %v1151 = vadd.f32 %v1148, 1.0
        %v1152 = vadd.f32 %v1150, 1.0
        %v1153 = vrcp.pop %v1151
        %v1154 = vmul.f32 %v1151, %v1153
        %v1155 = vsub.f32 1.0, %v1154
        %v1156 = vmul.f32 %v1153, %v1155
        %v1157 = vadd.f32 %v1153, %v1156
        %vm1158 = vweird.f32 %v1151
        %vm1159 = vweird.f32 %v1153
        %vm1160 = vmor %vm1158, %vm1159
        %v1161 = vsel %vm1160, %v1153, %v1157
        %v1162 = vand.u32 2147483647, %v1151
        %vm1163 = vcmp.eq.f32.partialorder %v1162, 8.507059e+37
        %v1164 = vand.u32 %v1151, 2147483648
        %v1165 = vor.u32 1.1754944e-38, %v1164
        %v1166 = vsel %vm1163, %v1165, %v1161
        %v1167 = vmul.f32 1.0, %v1166
        %v1168 = vrcp.pop %v1152
        %v1169 = vmul.f32 %v1152, %v1168
        %v1170 = vsub.f32 1.0, %v1169
        %v1171 = vmul.f32 %v1168, %v1170
        %v1172 = vadd.f32 %v1168, %v1171
        %vm1173 = vweird.f32 %v1152
        %vm1174 = vweird.f32 %v1168
        %vm1175 = vmor %vm1173, %vm1174
        %v1176 = vsel %vm1175, %v1168, %v1172
        %v1177 = vand.u32 2147483647, %v1152
        %vm1178 = vcmp.eq.f32.partialorder %v1177, 8.507059e+37
        %v1179 = vand.u32 %v1152, 2147483648
        %v1180 = vor.u32 1.1754944e-38, %v1179
        %v1181 = vsel %vm1178, %v1180, %v1176
        %v1182 = vmul.f32 1.0, %v1181
        %v1183 = vld [vmem:[%s763] sm:$0xff]
        %v1184 = vld [vmem:[%s763 + $0x8] sm:$0xff]
        %v1185 = vld [vmem:[%s763 + $0x10] sm:$0xff]
        %v1186 = vld [vmem:[%s763 + $0x18] sm:$0xff]
        %v1187 = vld [vmem:[%s763 + $0x20] sm:$0xff]
        %v1188 = vld [vmem:[%s763 + $0x28] sm:$0xff]
        %v1189 = vld [vmem:[%s763 + $0x30] sm:$0xff]
        %v1190 = vld [vmem:[%s763 + $0x38] sm:$0xff]
        %v1191 = vld [vmem:[%s763 + $0x40] sm:$0xff]
        %v1192 = vld [vmem:[%s763 + $0x48] sm:$0xff]
        %v1193 = vld [vmem:[%s763 + $0x50] sm:$0xff]
        %v1194 = vld [vmem:[%s763 + $0x58] sm:$0xff]
        %v1195 = vld [vmem:[%s766] sm:$0x1]
        %v1197 = vperm.slane %v1195, 0
        %vm1199 = vcmask 785408
        %v1201 = vsel %vm1199, %v1167, 0
        %v1204 = vsel %vm1199, %v1182, 0
        %1206 = vmatpush.msra.mxu0 0.0
        %1207 = vmatpush.msra.mxu0 0.0
        %1208 = vmatpush.msra.mxu0 0.0
        %1209 = vmatpush.msra.mxu0 0.0
        %1210 = vmatpush.msra.mxu0 %v1194
        %1211 = vmatpush.msra.mxu0 %v1193
        %1212 = vmatpush.msra.mxu0 %v1192
        %1213 = vmatpush.msra.mxu0 %v1191
        %1214 = vmatpush.msra.mxu0 %v1190
        %1215 = vmatpush.msra.mxu0 %v1189
        %1216 = vmatpush.msra.mxu0 %v1188
        %1217 = vmatpush.msra.mxu0 %v1187
        %1218 = vmatpush.msra.mxu0 %v1186
        %1219 = vmatpush.msra.mxu0 %v1185
        %1220 = vmatpush.msra.mxu0 %v1184
        %1221 = vmatpush.msra.mxu0 %v1183
        %1222 = vmatmul.f32.gmra.mxu0 %v1201
        %v1223 = vpop.f32.mrf.mxu0
        %v1224 = vadd.f32 %v1197, %v1223
        %1225 = vmatmul.f32.gmra.mxu0 %v1204
        %v1226 = vpop.f32.mrf.mxu0
        %v1227 = vadd.f32 %v1197, %v1226
        %1228 = vdwg.mxu0
        %v1229 = vxor.u32 %v1224, 2147483648
        %v1230 = vxor.u32 %v1227, 2147483648
        %v1231 = vmul.f32 %v1229, 1.442695
        %v1232 = vpow.pop %v1231
        %v1233 = vmul.f32 %v1230, 1.442695
        %v1234 = vpow.pop %v1233
        %v1235 = vadd.f32 %v1232, 1.0
        %v1236 = vadd.f32 %v1234, 1.0
        %v1237 = vrcp.pop %v1235
        %v1238 = vmul.f32 %v1235, %v1237
        %v1239 = vsub.f32 1.0, %v1238
        %v1240 = vmul.f32 %v1237, %v1239
        %v1241 = vadd.f32 %v1237, %v1240
        %vm1242 = vweird.f32 %v1235
        %vm1243 = vweird.f32 %v1237
        %vm1244 = vmor %vm1242, %vm1243
        %v1245 = vsel %vm1244, %v1237, %v1241
        %v1246 = vand.u32 2147483647, %v1235
        %vm1247 = vcmp.eq.f32.partialorder %v1246, 8.507059e+37
        %v1248 = vand.u32 %v1235, 2147483648
        %v1249 = vor.u32 1.1754944e-38, %v1248
        %v1250 = vsel %vm1247, %v1249, %v1245
        %v1251 = vmul.f32 1.0, %v1250
        %v1252 = vrcp.pop %v1236
        %v1253 = vmul.f32 %v1236, %v1252
        %v1254 = vsub.f32 1.0, %v1253
        %v1255 = vmul.f32 %v1252, %v1254
        %v1256 = vadd.f32 %v1252, %v1255
        %vm1257 = vweird.f32 %v1236
        %vm1258 = vweird.f32 %v1252
        %vm1259 = vmor %vm1257, %vm1258
        %v1260 = vsel %vm1259, %v1252, %v1256
        %v1261 = vand.u32 2147483647, %v1236
        %vm1262 = vcmp.eq.f32.partialorder %v1261, 8.507059e+37
        %v1263 = vand.u32 %v1236, 2147483648
        %v1264 = vor.u32 1.1754944e-38, %v1263
        %v1265 = vsel %vm1262, %v1264, %v1260
        %v1266 = vmul.f32 1.0, %v1265
        %v1267 = vadd.f32 %v1251, %v925
        %v1268 = vadd.f32 %v1266, %v926
        %v1269 = vld [vmem:[%s743] sm:$0x1]
        %v1270 = vld [vmem:[%s746] sm:$0x1]
        %v1271 = vsel %vm786, %v1267, 0.0
        %v1272 = vsel %vm786, %v1268, 0.0
        %v1273 = vadd.f32 %v1271, %v1272
        %v1274 = vrot.slane %v1273, 4
        %v1275 = vadd.f32 %v1273, %v1274
        %v1276 = vrot.slane %v1275, 2
        %v1277 = vadd.f32 %v1275, %v1276
        %v1278 = vrot.slane %v1277, 1
        %v1279 = vadd.f32 %v1277, %v1278
        %v1280 = vmul.f32 %v1279, %v888
        %v1281 = vsub.f32 %v1267, %v1280
        %v1282 = vsub.f32 %v1268, %v1280
        %v1283 = vmul.f32 %v1281, %v1281
        %v1284 = vmul.f32 %v1282, %v1282
        %v1285 = vsel %vm786, %v1283, 0.0
        %v1286 = vsel %vm786, %v1284, 0.0
        %v1287 = vadd.f32 %v1285, %v1286
        %v1288 = vrot.slane %v1287, 4
        %v1289 = vadd.f32 %v1287, %v1288
        %v1290 = vrot.slane %v1289, 2
        %v1291 = vadd.f32 %v1289, %v1290
        %v1292 = vrot.slane %v1291, 1
        %v1293 = vadd.f32 %v1291, %v1292
        %v1294 = vmul.f32 %v1293, %v888
        %v1295 = vadd.f32 %v1294, 1e-05
        %v1296 = vrsqrt.pop %v1295
        %v1297 = vmul.f32 %v1296, %v1295
        %v1298 = vmul.f32 %v1297, %v1296
        %v1299 = vmul.f32 0.5, %v1298
        %v1300 = vsub.f32 1.5, %v1299
        %v1301 = vmul.f32 %v1296, %v1300
        %vm1302 = vweird.f32 %v1295
        %vm1303 = vweird.f32 %v1296
        %vm1304 = vmor %vm1302, %vm1303
        %v1305 = vsel %vm1304, %v1296, %v1301
        %v1306 = vmul.f32 %v1281, %v1305
        %v1307 = vmul.f32 %v1282, %v1305
        %v1309 = vperm.slane %v1269, 0
        %v1311 = vmul.f32 %v1306, %v1309
        %v1312 = vmul.f32 %v1307, %v1309
        %v1314 = vperm.slane %v1270, 0
        %v1316 = vadd.f32 %v1311, %v1314
        %v1317 = vadd.f32 %v1312, %v1314
        %1318 = vst.msk [vmem:[#allocation2] sm:$0xff] %vm786, %v1316
        %1319 = vst.msk [vmem:[#allocation2 + $0x8] sm:$0xff] %vm786, %v1317
        %p1320 = scmp.eq.s32.totalorder %s33, 1
        // Predicated region
        $region97: #{tpu_custom_call.1} parent=87 // pred_check
          %p1321 = pneg %p1320
        $region98: #{tpu_custom_call.1} parent=87 // pred_check_branch
          %1323 = sbr.rel (%p1321) target = $region100
        $region99: #{tpu_custom_call.1} parent=87 // pred_region
          %v1324 = vld [vmem:[%s15] sm:$0xff]
          %v1325 = vld [vmem:[%s15 + $0x8] sm:$0xff]
          %v1326 = vld [vmem:[%s15 + $0x10] sm:$0xff]
          %v1327 = vld [vmem:[%s15 + $0x18] sm:$0xff]
          %v1328 = vld [vmem:[#allocation3] sm:$0x1]
          %v1330 = vperm.slane %v1328, 0
          %v1333 = vsel %vm786, %v1316, 0
          %v1336 = vsel %vm786, %v1317, 0
          %1338 = vmatpush.msra.mxu0 0.0
          %1339 = vmatpush.msra.mxu0 0.0
          %1340 = vmatpush.msra.mxu0 0.0
          %1341 = vmatpush.msra.mxu0 0.0
          %1342 = vmatpush.msra.mxu0 0.0
          %1343 = vmatpush.msra.mxu0 0.0
          %1344 = vmatpush.msra.mxu0 0.0
          %1345 = vmatpush.msra.mxu0 0.0
          %1346 = vmatpush.msra.mxu0 0.0
          %1347 = vmatpush.msra.mxu0 0.0
          %1348 = vmatpush.msra.mxu0 0.0
          %1349 = vmatpush.msra.mxu0 0.0
          %1350 = vmatpush.msra.mxu0 %v1327
          %1351 = vmatpush.msra.mxu0 %v1326
          %1352 = vmatpush.msra.mxu0 %v1325
          %1353 = vmatpush.msra.mxu0 %v1324
          %1354 = vmatmul.f32.gmra.mxu0 %v1333
          %v1355 = vpop.f32.mrf.mxu0
          %v1356 = vadd.f32 %v1330, %v1355
          %1357 = vmatmul.f32.gmra.mxu0 %v1336
          %v1358 = vpop.f32.mrf.mxu0
          %v1359 = vadd.f32 %v1330, %v1358
          %1360 = vdwg.mxu0
          %vm1361 = vcmask 7168
          %1362 = vst.msk [vmem:[%s17] sm:$0xff] %vm1361, %v1356
          %1363 = vst.msk [vmem:[%s17 + $0x8] sm:$0xff] %vm1361, %v1359
        $region100: #{tpu_custom_call.1} parent=87 // pred_fallthru
          _
        // Predicated region
        $region101: #{tpu_custom_call.1} parent=87 // pred_check
          %p1364 = pneg %p473
        $region102: #{tpu_custom_call.1} parent=87 // pred_check_branch
          %1366 = sbr.rel (%p1364) target = $region104
        $region103: #{tpu_custom_call.1} parent=87 // pred_region
          _
        $region104: #{tpu_custom_call.1} parent=87 // pred_fallthru
          _
        // Predicated region
        $region105: #{tpu_custom_call.1} parent=87 // pred_check
          %p1367 = pneg %p473
        $region106: #{tpu_custom_call.1} parent=87 // pred_check_branch
          %1369 = sbr.rel (%p1367) target = $region108
        $region107: #{tpu_custom_call.1} parent=87 // pred_region
          _
        $region108: #{tpu_custom_call.1} parent=87 // pred_fallthru
          _
      $region88: #{tpu_custom_call.1} parent=5 // pred_fallthru
        _
      %p1370 = scmp.le.s32.totalorder 2, %s28
      // Predicated region
      $region109: #{tpu_custom_call.1} parent=5 // pred_check
        %p1371 = pneg %p1370
      $region110: #{tpu_custom_call.1} parent=5 // pred_check_branch
        %1373 = sbr.rel (%p1371) target = $region112
      $region111: #{tpu_custom_call.1} parent=5 // pred_region
        %s1374 = ssub.s32 %s28, 2
      $region112: #{tpu_custom_call.1} parent=5 // pred_fallthru
        _
    $region6: #{tpu_custom_call.1} parent=1 // loop_footer
      %s32 = sadd.s32 1, %s28
    $region7: #{tpu_custom_call.1} parent=1 // loop_footer_branch
      %27 = sbr.rel target = $region3
    $region8: #{tpu_custom_call.1} parent=1 // loop_exit
      _
    %1375 = vsyncpa [#allocation5], 1
    %s1376 = scalar_lea.sflag [#allocation5], 1
    %1377 = vsyncpa %s1376, 1

</llo_original>
